<compile_context>
chip_gen: v7x
topology: tpu7x:2x2x1
jax: 0.10.0
libtpu: 0.0.40
codegen_flags: <defaults>
</compile_context>

<pallas_src>
import functools

import jax
import jax.numpy as jnp
from jax.experimental import pallas as pl
from jax.experimental.pallas import tpu as pltpu


def _round_up(x, m):
    return ((x + m - 1) // m) * m


def _gn_onepass(x, gamma, beta, inv_c, eps=1e-5):
    """GroupNorm(num_groups=1) over channels, single reduction pass.

    Padded channels are exactly zero (and gamma/beta are zero there), so
    summing over the padded width and dividing by the true channel count
    reproduces the unpadded statistics exactly.
    """
    s1 = jnp.sum(x, axis=-1, keepdims=True)
    s2 = jnp.sum(x * x, axis=-1, keepdims=True)
    mean = s1 * inv_c
    var = s2 * inv_c - mean * mean
    return (x - mean) * jax.lax.rsqrt(var + eps) * gamma + beta


def _attdest_kernel(agt_ctrs_ref, dest_ref, agts_ref, vecs_ref, w_ref, out_ref,
                    *, num_mods, inv_c):
    cp = out_ref.shape[1] // num_mods        # padded channel count (mult. of 128)

    # ---- resident parameters (constant index_map -> fetched once) -----------
    w1x = vecs_ref[0:1, :]                   # row 0 of Linear(2, C) weight
    w1y = vecs_ref[1:2, :]                   # row 1
    b1 = vecs_ref[2:3, :]
    g2 = vecs_ref[3:4, :]
    be2 = vecs_ref[4:5, :]
    g3 = vecs_ref[5:6, :]
    be3 = vecs_ref[6:7, :]
    w2 = w_ref[0 * cp:1 * cp, :]             # Linear(C, C), (in, out)
    w3d = w_ref[1 * cp:2 * cp, :]            # W3.T dist half
    w3a = w_ref[2 * cp:3 * cp, :]            # W3.T agts half

    # agts path: one matmul per batch tile, shared across all num_mods modes
    # (replaces the 6x repeated agts stream / matmul of the naive version).
    # Note: on v6e/v7x these matmuls could be fed bf16 for ~2x MXU throughput
    # (keep GN stats in f32); kept f32 here for tight numerical parity.
    h3a = jnp.dot(agts_ref[...], w3a, preferred_element_type=jnp.float32)

    cx = agt_ctrs_ref[:, 0:1]
    cy = agt_ctrs_ref[:, 1:2]

    # Static (unrolled) loop over modes; num_mods is small (e.g. 6).
    for m in range(num_mods):
        dx = cx - dest_ref[:, 2 * m:2 * m + 1]
        dy = cy - dest_ref[:, 2 * m + 1:2 * m + 2]

        # Linear(2, C) + bias + ReLU as two VPU FMAs (K=2 is a waste of the MXU).
        h1 = jnp.maximum(dx * w1x + dy * w1y + b1, 0.0)

        # Linear(C, C, bias=False) -> GroupNorm(1, C) -> ReLU
        h2 = jnp.dot(h1, w2, preferred_element_type=jnp.float32)
        h2 = jnp.maximum(_gn_onepass(h2, g2, be2, inv_c), 0.0)

        # cat([dist, agts], 1) @ W3.T  ==  h2 @ W3_dist + agts @ W3_agt
        h3 = jnp.dot(h2, w3d, preferred_element_type=jnp.float32) + h3a
        out_ref[:, m * cp:(m + 1) * cp] = jnp.maximum(
            _gn_onepass(h3, g3, be3, inv_c), 0.0)


def att_dest(agts, agt_ctrs, dest_ctrs, params, *, bs_tile=None):
    """agts: (bs, n_agt), agt_ctrs: (bs, 2), dest_ctrs: (bs, num_mods, 2)
       -> (bs*num_mods, n_agt) float32."""
    bs, n_agt = agts.shape
    num_mods = dest_ctrs.shape[1]
    f32 = jnp.float32

    c_pad = _round_up(n_agt, 128)            # lane-dense feature dim
    if bs_tile is None:
        # >=256 rows per matmul for the 256-wide MXU (v6e/v7x) when bs is big;
        # single grid step otherwise.  Must be a multiple of 8 (sublane tiling).
        bs_tile = _round_up(bs, 8) if bs <= 256 else 256
    bs_tile = _round_up(bs_tile, 8)
    bs_pad = _round_up(bs, bs_tile)
    grid = (bs_pad // bs_tile,)

    # ---- activations: pad batch to the tile, pad features to c_pad ----------
    agts_p = jnp.pad(agts.astype(f32), ((0, bs_pad - bs), (0, c_pad - n_agt)))
    ctrs_p = jnp.pad(agt_ctrs.astype(f32), ((0, bs_pad - bs), (0, 0)))
    dest_p = jnp.pad(dest_ctrs.astype(f32).reshape(bs, num_mods * 2),
                     ((0, bs_pad - bs), (0, 0)))

    # ---- parameters: transpose to (in, out), split W3, zero-pad to c_pad ----
    def pad_vec(v):
        return jnp.pad(v.astype(f32), (0, c_pad - n_agt))

    def pad_mat(m):                          # m is already (in, out)
        r, c = m.shape
        return jnp.pad(m.astype(f32), ((0, c_pad - r), (0, c_pad - c)))

    w1_t = params["w1"].astype(f32).T        # (2, n_agt)
    vecs = jnp.zeros((8, c_pad), f32)
    vecs = vecs.at[0, :].set(pad_vec(w1_t[0]))
    vecs = vecs.at[1, :].set(pad_vec(w1_t[1]))
    vecs = vecs.at[2, :].set(pad_vec(params["b1"]))
    vecs = vecs.at[3, :].set(pad_vec(params["g2"]))
    vecs = vecs.at[4, :].set(pad_vec(params["be2"]))
    vecs = vecs.at[5, :].set(pad_vec(params["g3"]))
    vecs = vecs.at[6, :].set(pad_vec(params["be3"]))

    w2 = pad_mat(params["w2"].astype(f32).T)             # (c_pad, c_pad)
    w3_t = params["w3"].astype(f32).T                    # (2*n_agt, n_agt)
    w3d = pad_mat(w3_t[:n_agt])
    w3a = pad_mat(w3_t[n_agt:])
    wstack = jnp.concatenate([w2, w3d, w3a], axis=0)     # (3*c_pad, c_pad)

    kernel = functools.partial(_attdest_kernel,
                               num_mods=num_mods, inv_c=1.0 / n_agt)

    # Per-step VMEM footprint (x2 double buffering) + headroom, capped for v7x.
    block_bytes = 4 * (bs_tile * (2 + 2 * num_mods + c_pad + num_mods * c_pad)
                       + 8 * c_pad + 3 * c_pad * c_pad)
    vmem_limit = int(min(64 << 20, max(32 << 20, 2 * block_bytes + (8 << 20))))

    n_rows = bs_pad * num_mods
    cost = pl.CostEstimate(
        flops=int(2 * c_pad * c_pad * (2 * n_rows + bs_pad)),
        transcendentals=int(2 * n_rows),
        bytes_accessed=int(4 * (bs_pad * (2 + 2 * num_mods + c_pad)
                                + 8 * c_pad + 3 * c_pad * c_pad
                                + n_rows * c_pad)),
    )

    out = pl.pallas_call(
        kernel,
        out_shape=jax.ShapeDtypeStruct((bs_pad, num_mods * c_pad), f32),
        grid_spec=pltpu.PrefetchScalarGridSpec(
            num_scalar_prefetch=0,
            grid=grid,
            in_specs=[
                pl.BlockSpec((bs_tile, 2), lambda i: (i, 0)),              # agt_ctrs
                pl.BlockSpec((bs_tile, 2 * num_mods), lambda i: (i, 0)),   # dest_ctrs
                pl.BlockSpec((bs_tile, c_pad), lambda i: (i, 0)),          # agts
                pl.BlockSpec((8, c_pad), lambda i: (0, 0)),                # fused vectors
                pl.BlockSpec((3 * c_pad, c_pad), lambda i: (0, 0)),        # stacked weights
            ],
            out_specs=pl.BlockSpec((bs_tile, num_mods * c_pad), lambda i: (i, 0)),
        ),
        compiler_params=pltpu.CompilerParams(
            dimension_semantics=("parallel",),
            vmem_limit_bytes=vmem_limit,
        ),
        cost_estimate=cost,
    )(ctrs_p, dest_p, agts_p, vecs, wstack)

    # Drop batch padding, restore (bs*num_mods, n_agt) row ordering (mode-minor,
    # identical to PyTorch's unsqueeze/repeat/view), drop channel padding.
    out = out[:bs].reshape(bs * num_mods, c_pad)
    if c_pad != n_agt:
        out = out[:, :n_agt]
    return out


# ----------------------------- pure-JAX reference -----------------------------
def _gn_ref(x, gamma, beta, eps=1e-5):
    mean = jnp.mean(x, axis=-1, keepdims=True)
    var = jnp.mean((x - mean) ** 2, axis=-1, keepdims=True)
    return (x - mean) * jax.lax.rsqrt(var + eps) * gamma + beta


def att_dest_ref(agts, agt_ctrs, dest_ctrs, params):
    bs, n_agt = agts.shape
    num_mods = dest_ctrs.shape[1]
    N = bs * num_mods
    dist = (agt_ctrs[:, None, :] - dest_ctrs).reshape(N, 2)
    h1 = jnp.maximum(dist @ params["w1"].T + params["b1"], 0.0)
    h2 = h1 @ params["w2"].T
    h2 = jnp.maximum(_gn_ref(h2, params["g2"], params["be2"]), 0.0)
    agts_rep = jnp.repeat(agts, num_mods, axis=0)
    x = jnp.concatenate([h2, agts_rep], axis=1)
    h3 = x @ params["w3"].T
    return jnp.maximum(_gn_ref(h3, params["g3"], params["be3"]), 0.0)


def _make_params(key, n_agt):
    ks = jax.random.split(key, 8)
    return {
        "w1": jax.random.normal(ks[0], (n_agt, 2), jnp.float32) / jnp.sqrt(2.0),
        "b1": 0.1 * jax.random.normal(ks[1], (n_agt,), jnp.float32),
        "w2": jax.random.normal(ks[2], (n_agt, n_agt), jnp.float32) / jnp.sqrt(float(n_agt)),
        "g2": 1.0 + 0.1 * jax.random.normal(ks[3], (n_agt,), jnp.float32),
        "be2": 0.1 * jax.random.normal(ks[4], (n_agt,), jnp.float32),
        "w3": jax.random.normal(ks[5], (n_agt, 2 * n_agt), jnp.float32) / jnp.sqrt(2.0 * n_agt),
        "g3": 1.0 + 0.1 * jax.random.normal(ks[6], (n_agt,), jnp.float32),
        "be3": 0.1 * jax.random.normal(ks[7], (n_agt,), jnp.float32),
    }


if __name__ == "__main__":
    key = jax.random.PRNGKey(0)

    # --- small config matching the module's test shapes ----------------------
    n_agt, bs, num_mods = 32, 2, 6
    kp, k1, k2, k3, key = jax.random.split(key, 5)
    params = _make_params(kp, n_agt)
    agts = jax.random.normal(k1, (bs, n_agt), jnp.float32)
    agt_ctrs = jax.random.normal(k2, (bs, 2), jnp.float32)
    dest_ctrs = jax.random.normal(k3, (bs, num_mods, 2), jnp.float32)

    out = jax.block_until_ready(att_dest(agts, agt_ctrs, dest_ctrs, params))
    ref = jax.block_until_ready(att_dest_ref(agts, agt_ctrs, dest_ctrs, params))
    assert out.shape == (bs * num_mods, n_agt), out.shape
    assert jnp.allclose(out, ref, rtol=1e-4, atol=1e-4), float(jnp.max(jnp.abs(out - ref)))

    # --- second config: n_agt=128 (lane-dense), multi-step grid + batch pad ---
    n_agt2, bs2, num_mods2 = 128, 40, 6
    kp, k1, k2, k3, key = jax.random.split(key, 5)
    params2 = _make_params(kp, n_agt2)
    agts2 = jax.random.normal(k1, (bs2, n_agt2), jnp.float32)
    agt_ctrs2 = jax.random.normal(k2, (bs2, 2), jnp.float32)
    dest_ctrs2 = jax.random.normal(k3, (bs2, num_mods2, 2), jnp.float32)

    out2 = jax.block_until_ready(
        att_dest(agts2, agt_ctrs2, dest_ctrs2, params2, bs_tile=16))
    ref2 = jax.block_until_ready(att_dest_ref(agts2, agt_ctrs2, dest_ctrs2, params2))
    assert out2.shape == (bs2 * num_mods2, n_agt2), out2.shape
    assert jnp.allclose(out2, ref2, rtol=1e-4, atol=1e-4), float(jnp.max(jnp.abs(out2 - ref2)))

    print("KERNEL_OK")
</pallas_src>

<mosaic_0001>
module attributes {stable_mosaic.version = 11 : i64} {
  func.func @_attdest_kernel(%arg0: i32, %arg1: memref<8x2xf32, #tpu.memory_space<vmem>>, %arg2: memref<8x12xf32, #tpu.memory_space<vmem>>, %arg3: memref<8x128xf32, #tpu.memory_space<vmem>>, %arg4: memref<8x128xf32, #tpu.memory_space<vmem>>, %arg5: memref<384x128xf32, #tpu.memory_space<vmem>>, %arg6: memref<8x768xf32, #tpu.memory_space<vmem>>) attributes {dimension_semantics = [#tpu.dimension_semantics<parallel>], iteration_bounds = array<i64: 1>, scalar_prefetch = 0 : i64, scratch_operands = 0 : i64, tpu.core_type = #tpu.core_type<tc>, window_params = [{transform_indices = @transform_0, window_bounds = array<i64: 8, 2>}, {transform_indices = @transform_1, window_bounds = array<i64: 8, 12>}, {transform_indices = @transform_2, window_bounds = array<i64: 8, 128>}, {pipeline_mode = #tpu.pipeline_mode<synchronous>, transform_indices = @transform_3, window_bounds = array<i64: 8, 128>}, {pipeline_mode = #tpu.pipeline_mode<synchronous>, transform_indices = @transform_4, window_bounds = array<i64: 384, 128>}, {transform_indices = @transform_5, window_bounds = array<i64: 8, 768>}]} {
    %c0 = arith.constant 0 : index
    %c0_0 = arith.constant 0 : index
    %0 = vector.load %arg4[%c0, %c0_0] : memref<8x128xf32, #tpu.memory_space<vmem>>, vector<1x128xf32>
    %c1 = arith.constant 1 : index
    %c0_1 = arith.constant 0 : index
    %1 = vector.load %arg4[%c1, %c0_1] : memref<8x128xf32, #tpu.memory_space<vmem>>, vector<1x128xf32>
    %c2 = arith.constant 2 : index
    %c0_2 = arith.constant 0 : index
    %2 = vector.load %arg4[%c2, %c0_2] : memref<8x128xf32, #tpu.memory_space<vmem>>, vector<1x128xf32>
    %c3 = arith.constant 3 : index
    %c0_3 = arith.constant 0 : index
    %3 = vector.load %arg4[%c3, %c0_3] : memref<8x128xf32, #tpu.memory_space<vmem>>, vector<1x128xf32>
    %c4 = arith.constant 4 : index
    %c0_4 = arith.constant 0 : index
    %4 = vector.load %arg4[%c4, %c0_4] : memref<8x128xf32, #tpu.memory_space<vmem>>, vector<1x128xf32>
    %c5 = arith.constant 5 : index
    %c0_5 = arith.constant 0 : index
    %5 = vector.load %arg4[%c5, %c0_5] : memref<8x128xf32, #tpu.memory_space<vmem>>, vector<1x128xf32>
    %c6 = arith.constant 6 : index
    %c0_6 = arith.constant 0 : index
    %6 = vector.load %arg4[%c6, %c0_6] : memref<8x128xf32, #tpu.memory_space<vmem>>, vector<1x128xf32>
    %c0_7 = arith.constant 0 : index
    %c0_8 = arith.constant 0 : index
    %7 = vector.load %arg5[%c0_7, %c0_8] : memref<384x128xf32, #tpu.memory_space<vmem>>, vector<128x128xf32>
    %c128 = arith.constant 128 : index
    %c0_9 = arith.constant 0 : index
    %8 = vector.load %arg5[%c128, %c0_9] : memref<384x128xf32, #tpu.memory_space<vmem>>, vector<128x128xf32>
    %c256 = arith.constant 256 : index
    %c0_10 = arith.constant 0 : index
    %9 = vector.load %arg5[%c256, %c0_10] : memref<384x128xf32, #tpu.memory_space<vmem>>, vector<128x128xf32>
    %c0_11 = arith.constant 0 : index
    %c0_12 = arith.constant 0 : index
    %10 = vector.load %arg3[%c0_11, %c0_12] : memref<8x128xf32, #tpu.memory_space<vmem>>, vector<8x128xf32>
    %cst = arith.constant dense<0.000000e+00> : vector<8x128xf32>
    %11 = tpu.matmul %10, %9, %cst {dimension_numbers = #tpu.dot_dimension_numbers<[1], [0], [0], [1], [0, 0, 1, 1], [], []>} : vector<8x128xf32>, vector<128x128xf32>, vector<8x128xf32> -> vector<8x128xf32>
    %c0_13 = arith.constant 0 : index
    %c0_14 = arith.constant 0 : index
    %12 = vector.load %arg1[%c0_13, %c0_14] : memref<8x2xf32, #tpu.memory_space<vmem>>, vector<8x1xf32>
    %c0_15 = arith.constant 0 : index
    %c1_16 = arith.constant 1 : index
    %13 = vector.load %arg1[%c0_15, %c1_16] : memref<8x2xf32, #tpu.memory_space<vmem>>, vector<8x1xf32>
    %c0_17 = arith.constant 0 : index
    %c0_18 = arith.constant 0 : index
    %14 = vector.load %arg2[%c0_17, %c0_18] : memref<8x12xf32, #tpu.memory_space<vmem>>, vector<8x1xf32>
    %15 = arith.subf %12, %14 : vector<8x1xf32>
    %c0_19 = arith.constant 0 : index
    %c1_20 = arith.constant 1 : index
    %16 = vector.load %arg2[%c0_19, %c1_20] : memref<8x12xf32, #tpu.memory_space<vmem>>, vector<8x1xf32>
    %17 = arith.subf %13, %16 : vector<8x1xf32>
    %18 = vector.broadcast %15 : vector<8x1xf32> to vector<8x128xf32>
    %19 = vector.broadcast %0 : vector<1x128xf32> to vector<8x128xf32>
    %20 = arith.mulf %18, %19 : vector<8x128xf32>
    %21 = vector.broadcast %17 : vector<8x1xf32> to vector<8x128xf32>
    %22 = vector.broadcast %1 : vector<1x128xf32> to vector<8x128xf32>
    %23 = arith.mulf %21, %22 : vector<8x128xf32>
    %24 = arith.addf %20, %23 : vector<8x128xf32>
    %25 = vector.broadcast %2 : vector<1x128xf32> to vector<8x128xf32>
    %26 = arith.addf %24, %25 : vector<8x128xf32>
    %cst_21 = arith.constant 0.000000e+00 : f32
    %27 = vector.broadcast %cst_21 : f32 to vector<8x128xf32>
    %28 = arith.maximumf %26, %27 : vector<8x128xf32>
    %cst_22 = arith.constant dense<0.000000e+00> : vector<8x128xf32>
    %29 = tpu.matmul %28, %7, %cst_22 {dimension_numbers = #tpu.dot_dimension_numbers<[1], [0], [0], [1], [0, 0, 1, 1], [], []>} : vector<8x128xf32>, vector<128x128xf32>, vector<8x128xf32> -> vector<8x128xf32>
    %cst_23 = arith.constant dense<0.000000e+00> : vector<8xf32>
    %30 = vector.multi_reduction <add>, %29, %cst_23 [1] : vector<8x128xf32> to vector<8xf32>
    %31 = vector.shape_cast %30 : vector<8xf32> to vector<8x1xf32>
    %32 = arith.mulf %29, %29 : vector<8x128xf32>
    %cst_24 = arith.constant dense<0.000000e+00> : vector<8xf32>
    %33 = vector.multi_reduction <add>, %32, %cst_24 [1] : vector<8x128xf32> to vector<8xf32>
    %34 = vector.shape_cast %33 : vector<8xf32> to vector<8x1xf32>
    %cst_25 = arith.constant 3.125000e-02 : f32
    %35 = vector.broadcast %cst_25 : f32 to vector<8x1xf32>
    %36 = arith.mulf %31, %35 : vector<8x1xf32>
    %cst_26 = arith.constant 3.125000e-02 : f32
    %37 = vector.broadcast %cst_26 : f32 to vector<8x1xf32>
    %38 = arith.mulf %34, %37 : vector<8x1xf32>
    %39 = arith.mulf %36, %36 : vector<8x1xf32>
    %40 = arith.subf %38, %39 : vector<8x1xf32>
    %41 = vector.broadcast %36 : vector<8x1xf32> to vector<8x128xf32>
    %42 = arith.subf %29, %41 : vector<8x128xf32>
    %cst_27 = arith.constant 9.99999974E-6 : f32
    %43 = vector.broadcast %cst_27 : f32 to vector<8x1xf32>
    %44 = arith.addf %40, %43 : vector<8x1xf32>
    %45 = math.rsqrt %44 : vector<8x1xf32>
    %46 = vector.broadcast %45 : vector<8x1xf32> to vector<8x128xf32>
    %47 = arith.mulf %42, %46 : vector<8x128xf32>
    %48 = vector.broadcast %3 : vector<1x128xf32> to vector<8x128xf32>
    %49 = arith.mulf %47, %48 : vector<8x128xf32>
    %50 = vector.broadcast %4 : vector<1x128xf32> to vector<8x128xf32>
    %51 = arith.addf %49, %50 : vector<8x128xf32>
    %cst_28 = arith.constant 0.000000e+00 : f32
    %52 = vector.broadcast %cst_28 : f32 to vector<8x128xf32>
    %53 = arith.maximumf %51, %52 : vector<8x128xf32>
    %cst_29 = arith.constant dense<0.000000e+00> : vector<8x128xf32>
    %54 = tpu.matmul %53, %8, %cst_29 {dimension_numbers = #tpu.dot_dimension_numbers<[1], [0], [0], [1], [0, 0, 1, 1], [], []>} : vector<8x128xf32>, vector<128x128xf32>, vector<8x128xf32> -> vector<8x128xf32>
    %55 = arith.addf %54, %11 : vector<8x128xf32>
    %cst_30 = arith.constant dense<0.000000e+00> : vector<8xf32>
    %56 = vector.multi_reduction <add>, %55, %cst_30 [1] : vector<8x128xf32> to vector<8xf32>
    %57 = vector.shape_cast %56 : vector<8xf32> to vector<8x1xf32>
    %58 = arith.mulf %55, %55 : vector<8x128xf32>
    %cst_31 = arith.constant dense<0.000000e+00> : vector<8xf32>
    %59 = vector.multi_reduction <add>, %58, %cst_31 [1] : vector<8x128xf32> to vector<8xf32>
    %60 = vector.shape_cast %59 : vector<8xf32> to vector<8x1xf32>
    %cst_32 = arith.constant 3.125000e-02 : f32
    %61 = vector.broadcast %cst_32 : f32 to vector<8x1xf32>
    %62 = arith.mulf %57, %61 : vector<8x1xf32>
    %cst_33 = arith.constant 3.125000e-02 : f32
    %63 = vector.broadcast %cst_33 : f32 to vector<8x1xf32>
    %64 = arith.mulf %60, %63 : vector<8x1xf32>
    %65 = arith.mulf %62, %62 : vector<8x1xf32>
    %66 = arith.subf %64, %65 : vector<8x1xf32>
    %67 = vector.broadcast %62 : vector<8x1xf32> to vector<8x128xf32>
    %68 = arith.subf %55, %67 : vector<8x128xf32>
    %cst_34 = arith.constant 9.99999974E-6 : f32
    %69 = vector.broadcast %cst_34 : f32 to vector<8x1xf32>
    %70 = arith.addf %66, %69 : vector<8x1xf32>
    %71 = math.rsqrt %70 : vector<8x1xf32>
    %72 = vector.broadcast %71 : vector<8x1xf32> to vector<8x128xf32>
    %73 = arith.mulf %68, %72 : vector<8x128xf32>
    %74 = vector.broadcast %5 : vector<1x128xf32> to vector<8x128xf32>
    %75 = arith.mulf %73, %74 : vector<8x128xf32>
    %76 = vector.broadcast %6 : vector<1x128xf32> to vector<8x128xf32>
    %77 = arith.addf %75, %76 : vector<8x128xf32>
    %cst_35 = arith.constant 0.000000e+00 : f32
    %78 = vector.broadcast %cst_35 : f32 to vector<8x128xf32>
    %79 = arith.maximumf %77, %78 : vector<8x128xf32>
    %c0_36 = arith.constant 0 : index
    %c0_37 = arith.constant 0 : index
    %80 = vector.load %arg6[%c0_36, %c0_37] : memref<8x768xf32, #tpu.memory_space<vmem>>, vector<8x128xf32>
    tpu.vector_store %arg6[%c0_36, %c0_37], %79 {strides = array<i32>} : memref<8x768xf32, #tpu.memory_space<vmem>>, vector<8x128xf32>,
    %c0_38 = arith.constant 0 : index
    %c2_39 = arith.constant 2 : index
    %81 = vector.load %arg2[%c0_38, %c2_39] : memref<8x12xf32, #tpu.memory_space<vmem>>, vector<8x1xf32>
    %82 = arith.subf %12, %81 : vector<8x1xf32>
    %c0_40 = arith.constant 0 : index
    %c3_41 = arith.constant 3 : index
    %83 = vector.load %arg2[%c0_40, %c3_41] : memref<8x12xf32, #tpu.memory_space<vmem>>, vector<8x1xf32>
    %84 = arith.subf %13, %83 : vector<8x1xf32>
    %85 = vector.broadcast %82 : vector<8x1xf32> to vector<8x128xf32>
    %86 = vector.broadcast %0 : vector<1x128xf32> to vector<8x128xf32>
    %87 = arith.mulf %85, %86 : vector<8x128xf32>
    %88 = vector.broadcast %84 : vector<8x1xf32> to vector<8x128xf32>
    %89 = vector.broadcast %1 : vector<1x128xf32> to vector<8x128xf32>
    %90 = arith.mulf %88, %89 : vector<8x128xf32>
    %91 = arith.addf %87, %90 : vector<8x128xf32>
    %92 = vector.broadcast %2 : vector<1x128xf32> to vector<8x128xf32>
    %93 = arith.addf %91, %92 : vector<8x128xf32>
    %cst_42 = arith.constant 0.000000e+00 : f32
    %94 = vector.broadcast %cst_42 : f32 to vector<8x128xf32>
    %95 = arith.maximumf %93, %94 : vector<8x128xf32>
    %cst_43 = arith.constant dense<0.000000e+00> : vector<8x128xf32>
    %96 = tpu.matmul %95, %7, %cst_43 {dimension_numbers = #tpu.dot_dimension_numbers<[1], [0], [0], [1], [0, 0, 1, 1], [], []>} : vector<8x128xf32>, vector<128x128xf32>, vector<8x128xf32> -> vector<8x128xf32>
    %cst_44 = arith.constant dense<0.000000e+00> : vector<8xf32>
    %97 = vector.multi_reduction <add>, %96, %cst_44 [1] : vector<8x128xf32> to vector<8xf32>
    %98 = vector.shape_cast %97 : vector<8xf32> to vector<8x1xf32>
    %99 = arith.mulf %96, %96 : vector<8x128xf32>
    %cst_45 = arith.constant dense<0.000000e+00> : vector<8xf32>
    %100 = vector.multi_reduction <add>, %99, %cst_45 [1] : vector<8x128xf32> to vector<8xf32>
    %101 = vector.shape_cast %100 : vector<8xf32> to vector<8x1xf32>
    %cst_46 = arith.constant 3.125000e-02 : f32
    %102 = vector.broadcast %cst_46 : f32 to vector<8x1xf32>
    %103 = arith.mulf %98, %102 : vector<8x1xf32>
    %cst_47 = arith.constant 3.125000e-02 : f32
    %104 = vector.broadcast %cst_47 : f32 to vector<8x1xf32>
    %105 = arith.mulf %101, %104 : vector<8x1xf32>
    %106 = arith.mulf %103, %103 : vector<8x1xf32>
    %107 = arith.subf %105, %106 : vector<8x1xf32>
    %108 = vector.broadcast %103 : vector<8x1xf32> to vector<8x128xf32>
    %109 = arith.subf %96, %108 : vector<8x128xf32>
    %cst_48 = arith.constant 9.99999974E-6 : f32
    %110 = vector.broadcast %cst_48 : f32 to vector<8x1xf32>
    %111 = arith.addf %107, %110 : vector<8x1xf32>
    %112 = math.rsqrt %111 : vector<8x1xf32>
    %113 = vector.broadcast %112 : vector<8x1xf32> to vector<8x128xf32>
    %114 = arith.mulf %109, %113 : vector<8x128xf32>
    %115 = vector.broadcast %3 : vector<1x128xf32> to vector<8x128xf32>
    %116 = arith.mulf %114, %115 : vector<8x128xf32>
    %117 = vector.broadcast %4 : vector<1x128xf32> to vector<8x128xf32>
    %118 = arith.addf %116, %117 : vector<8x128xf32>
    %cst_49 = arith.constant 0.000000e+00 : f32
    %119 = vector.broadcast %cst_49 : f32 to vector<8x128xf32>
    %120 = arith.maximumf %118, %119 : vector<8x128xf32>
    %cst_50 = arith.constant dense<0.000000e+00> : vector<8x128xf32>
    %121 = tpu.matmul %120, %8, %cst_50 {dimension_numbers = #tpu.dot_dimension_numbers<[1], [0], [0], [1], [0, 0, 1, 1], [], []>} : vector<8x128xf32>, vector<128x128xf32>, vector<8x128xf32> -> vector<8x128xf32>
    %122 = arith.addf %121, %11 : vector<8x128xf32>
    %cst_51 = arith.constant dense<0.000000e+00> : vector<8xf32>
    %123 = vector.multi_reduction <add>, %122, %cst_51 [1] : vector<8x128xf32> to vector<8xf32>
    %124 = vector.shape_cast %123 : vector<8xf32> to vector<8x1xf32>
    %125 = arith.mulf %122, %122 : vector<8x128xf32>
    %cst_52 = arith.constant dense<0.000000e+00> : vector<8xf32>
    %126 = vector.multi_reduction <add>, %125, %cst_52 [1] : vector<8x128xf32> to vector<8xf32>
    %127 = vector.shape_cast %126 : vector<8xf32> to vector<8x1xf32>
    %cst_53 = arith.constant 3.125000e-02 : f32
    %128 = vector.broadcast %cst_53 : f32 to vector<8x1xf32>
    %129 = arith.mulf %124, %128 : vector<8x1xf32>
    %cst_54 = arith.constant 3.125000e-02 : f32
    %130 = vector.broadcast %cst_54 : f32 to vector<8x1xf32>
    %131 = arith.mulf %127, %130 : vector<8x1xf32>
    %132 = arith.mulf %129, %129 : vector<8x1xf32>
    %133 = arith.subf %131, %132 : vector<8x1xf32>
    %134 = vector.broadcast %129 : vector<8x1xf32> to vector<8x128xf32>
    %135 = arith.subf %122, %134 : vector<8x128xf32>
    %cst_55 = arith.constant 9.99999974E-6 : f32
    %136 = vector.broadcast %cst_55 : f32 to vector<8x1xf32>
    %137 = arith.addf %133, %136 : vector<8x1xf32>
    %138 = math.rsqrt %137 : vector<8x1xf32>
    %139 = vector.broadcast %138 : vector<8x1xf32> to vector<8x128xf32>
    %140 = arith.mulf %135, %139 : vector<8x128xf32>
    %141 = vector.broadcast %5 : vector<1x128xf32> to vector<8x128xf32>
    %142 = arith.mulf %140, %141 : vector<8x128xf32>
    %143 = vector.broadcast %6 : vector<1x128xf32> to vector<8x128xf32>
    %144 = arith.addf %142, %143 : vector<8x128xf32>
    %cst_56 = arith.constant 0.000000e+00 : f32
    %145 = vector.broadcast %cst_56 : f32 to vector<8x128xf32>
    %146 = arith.maximumf %144, %145 : vector<8x128xf32>
    %c0_57 = arith.constant 0 : index
    %c128_58 = arith.constant 128 : index
    %147 = vector.load %arg6[%c0_57, %c128_58] : memref<8x768xf32, #tpu.memory_space<vmem>>, vector<8x128xf32>
    tpu.vector_store %arg6[%c0_57, %c128_58], %146 {strides = array<i32>} : memref<8x768xf32, #tpu.memory_space<vmem>>, vector<8x128xf32>,
    %c0_59 = arith.constant 0 : index
    %c4_60 = arith.constant 4 : index
    %148 = vector.load %arg2[%c0_59, %c4_60] : memref<8x12xf32, #tpu.memory_space<vmem>>, vector<8x1xf32>
    %149 = arith.subf %12, %148 : vector<8x1xf32>
    %c0_61 = arith.constant 0 : index
    %c5_62 = arith.constant 5 : index
    %150 = vector.load %arg2[%c0_61, %c5_62] : memref<8x12xf32, #tpu.memory_space<vmem>>, vector<8x1xf32>
    %151 = arith.subf %13, %150 : vector<8x1xf32>
    %152 = vector.broadcast %149 : vector<8x1xf32> to vector<8x128xf32>
    %153 = vector.broadcast %0 : vector<1x128xf32> to vector<8x128xf32>
    %154 = arith.mulf %152, %153 : vector<8x128xf32>
    %155 = vector.broadcast %151 : vector<8x1xf32> to vector<8x128xf32>
    %156 = vector.broadcast %1 : vector<1x128xf32> to vector<8x128xf32>
    %157 = arith.mulf %155, %156 : vector<8x128xf32>
    %158 = arith.addf %154, %157 : vector<8x128xf32>
    %159 = vector.broadcast %2 : vector<1x128xf32> to vector<8x128xf32>
    %160 = arith.addf %158, %159 : vector<8x128xf32>
    %cst_63 = arith.constant 0.000000e+00 : f32
    %161 = vector.broadcast %cst_63 : f32 to vector<8x128xf32>
    %162 = arith.maximumf %160, %161 : vector<8x128xf32>
    %cst_64 = arith.constant dense<0.000000e+00> : vector<8x128xf32>
    %163 = tpu.matmul %162, %7, %cst_64 {dimension_numbers = #tpu.dot_dimension_numbers<[1], [0], [0], [1], [0, 0, 1, 1], [], []>} : vector<8x128xf32>, vector<128x128xf32>, vector<8x128xf32> -> vector<8x128xf32>
    %cst_65 = arith.constant dense<0.000000e+00> : vector<8xf32>
    %164 = vector.multi_reduction <add>, %163, %cst_65 [1] : vector<8x128xf32> to vector<8xf32>
    %165 = vector.shape_cast %164 : vector<8xf32> to vector<8x1xf32>
    %166 = arith.mulf %163, %163 : vector<8x128xf32>
    %cst_66 = arith.constant dense<0.000000e+00> : vector<8xf32>
    %167 = vector.multi_reduction <add>, %166, %cst_66 [1] : vector<8x128xf32> to vector<8xf32>
    %168 = vector.shape_cast %167 : vector<8xf32> to vector<8x1xf32>
    %cst_67 = arith.constant 3.125000e-02 : f32
    %169 = vector.broadcast %cst_67 : f32 to vector<8x1xf32>
    %170 = arith.mulf %165, %169 : vector<8x1xf32>
    %cst_68 = arith.constant 3.125000e-02 : f32
    %171 = vector.broadcast %cst_68 : f32 to vector<8x1xf32>
    %172 = arith.mulf %168, %171 : vector<8x1xf32>
    %173 = arith.mulf %170, %170 : vector<8x1xf32>
    %174 = arith.subf %172, %173 : vector<8x1xf32>
    %175 = vector.broadcast %170 : vector<8x1xf32> to vector<8x128xf32>
    %176 = arith.subf %163, %175 : vector<8x128xf32>
    %cst_69 = arith.constant 9.99999974E-6 : f32
    %177 = vector.broadcast %cst_69 : f32 to vector<8x1xf32>
    %178 = arith.addf %174, %177 : vector<8x1xf32>
    %179 = math.rsqrt %178 : vector<8x1xf32>
    %180 = vector.broadcast %179 : vector<8x1xf32> to vector<8x128xf32>
    %181 = arith.mulf %176, %180 : vector<8x128xf32>
    %182 = vector.broadcast %3 : vector<1x128xf32> to vector<8x128xf32>
    %183 = arith.mulf %181, %182 : vector<8x128xf32>
    %184 = vector.broadcast %4 : vector<1x128xf32> to vector<8x128xf32>
    %185 = arith.addf %183, %184 : vector<8x128xf32>
    %cst_70 = arith.constant 0.000000e+00 : f32
    %186 = vector.broadcast %cst_70 : f32 to vector<8x128xf32>
    %187 = arith.maximumf %185, %186 : vector<8x128xf32>
    %cst_71 = arith.constant dense<0.000000e+00> : vector<8x128xf32>
    %188 = tpu.matmul %187, %8, %cst_71 {dimension_numbers = #tpu.dot_dimension_numbers<[1], [0], [0], [1], [0, 0, 1, 1], [], []>} : vector<8x128xf32>, vector<128x128xf32>, vector<8x128xf32> -> vector<8x128xf32>
    %189 = arith.addf %188, %11 : vector<8x128xf32>
    %cst_72 = arith.constant dense<0.000000e+00> : vector<8xf32>
    %190 = vector.multi_reduction <add>, %189, %cst_72 [1] : vector<8x128xf32> to vector<8xf32>
    %191 = vector.shape_cast %190 : vector<8xf32> to vector<8x1xf32>
    %192 = arith.mulf %189, %189 : vector<8x128xf32>
    %cst_73 = arith.constant dense<0.000000e+00> : vector<8xf32>
    %193 = vector.multi_reduction <add>, %192, %cst_73 [1] : vector<8x128xf32> to vector<8xf32>
    %194 = vector.shape_cast %193 : vector<8xf32> to vector<8x1xf32>
    %cst_74 = arith.constant 3.125000e-02 : f32
    %195 = vector.broadcast %cst_74 : f32 to vector<8x1xf32>
    %196 = arith.mulf %191, %195 : vector<8x1xf32>
    %cst_75 = arith.constant 3.125000e-02 : f32
    %197 = vector.broadcast %cst_75 : f32 to vector<8x1xf32>
    %198 = arith.mulf %194, %197 : vector<8x1xf32>
    %199 = arith.mulf %196, %196 : vector<8x1xf32>
    %200 = arith.subf %198, %199 : vector<8x1xf32>
    %201 = vector.broadcast %196 : vector<8x1xf32> to vector<8x128xf32>
    %202 = arith.subf %189, %201 : vector<8x128xf32>
    %cst_76 = arith.constant 9.99999974E-6 : f32
    %203 = vector.broadcast %cst_76 : f32 to vector<8x1xf32>
    %204 = arith.addf %200, %203 : vector<8x1xf32>
    %205 = math.rsqrt %204 : vector<8x1xf32>
    %206 = vector.broadcast %205 : vector<8x1xf32> to vector<8x128xf32>
    %207 = arith.mulf %202, %206 : vector<8x128xf32>
    %208 = vector.broadcast %5 : vector<1x128xf32> to vector<8x128xf32>
    %209 = arith.mulf %207, %208 : vector<8x128xf32>
    %210 = vector.broadcast %6 : vector<1x128xf32> to vector<8x128xf32>
    %211 = arith.addf %209, %210 : vector<8x128xf32>
    %cst_77 = arith.constant 0.000000e+00 : f32
    %212 = vector.broadcast %cst_77 : f32 to vector<8x128xf32>
    %213 = arith.maximumf %211, %212 : vector<8x128xf32>
    %c0_78 = arith.constant 0 : index
    %c256_79 = arith.constant 256 : index
    %214 = vector.load %arg6[%c0_78, %c256_79] : memref<8x768xf32, #tpu.memory_space<vmem>>, vector<8x128xf32>
    tpu.vector_store %arg6[%c0_78, %c256_79], %213 {strides = array<i32>} : memref<8x768xf32, #tpu.memory_space<vmem>>, vector<8x128xf32>,
    %c0_80 = arith.constant 0 : index
    %c6_81 = arith.constant 6 : index
    %215 = vector.load %arg2[%c0_80, %c6_81] : memref<8x12xf32, #tpu.memory_space<vmem>>, vector<8x1xf32>
    %216 = arith.subf %12, %215 : vector<8x1xf32>
    %c0_82 = arith.constant 0 : index
    %c7 = arith.constant 7 : index
    %217 = vector.load %arg2[%c0_82, %c7] : memref<8x12xf32, #tpu.memory_space<vmem>>, vector<8x1xf32>
    %218 = arith.subf %13, %217 : vector<8x1xf32>
    %219 = vector.broadcast %216 : vector<8x1xf32> to vector<8x128xf32>
    %220 = vector.broadcast %0 : vector<1x128xf32> to vector<8x128xf32>
    %221 = arith.mulf %219, %220 : vector<8x128xf32>
    %222 = vector.broadcast %218 : vector<8x1xf32> to vector<8x128xf32>
    %223 = vector.broadcast %1 : vector<1x128xf32> to vector<8x128xf32>
    %224 = arith.mulf %222, %223 : vector<8x128xf32>
    %225 = arith.addf %221, %224 : vector<8x128xf32>
    %226 = vector.broadcast %2 : vector<1x128xf32> to vector<8x128xf32>
    %227 = arith.addf %225, %226 : vector<8x128xf32>
    %cst_83 = arith.constant 0.000000e+00 : f32
    %228 = vector.broadcast %cst_83 : f32 to vector<8x128xf32>
    %229 = arith.maximumf %227, %228 : vector<8x128xf32>
    %cst_84 = arith.constant dense<0.000000e+00> : vector<8x128xf32>
    %230 = tpu.matmul %229, %7, %cst_84 {dimension_numbers = #tpu.dot_dimension_numbers<[1], [0], [0], [1], [0, 0, 1, 1], [], []>} : vector<8x128xf32>, vector<128x128xf32>, vector<8x128xf32> -> vector<8x128xf32>
    %cst_85 = arith.constant dense<0.000000e+00> : vector<8xf32>
    %231 = vector.multi_reduction <add>, %230, %cst_85 [1] : vector<8x128xf32> to vector<8xf32>
    %232 = vector.shape_cast %231 : vector<8xf32> to vector<8x1xf32>
    %233 = arith.mulf %230, %230 : vector<8x128xf32>
    %cst_86 = arith.constant dense<0.000000e+00> : vector<8xf32>
    %234 = vector.multi_reduction <add>, %233, %cst_86 [1] : vector<8x128xf32> to vector<8xf32>
    %235 = vector.shape_cast %234 : vector<8xf32> to vector<8x1xf32>
    %cst_87 = arith.constant 3.125000e-02 : f32
    %236 = vector.broadcast %cst_87 : f32 to vector<8x1xf32>
    %237 = arith.mulf %232, %236 : vector<8x1xf32>
    %cst_88 = arith.constant 3.125000e-02 : f32
    %238 = vector.broadcast %cst_88 : f32 to vector<8x1xf32>
    %239 = arith.mulf %235, %238 : vector<8x1xf32>
    %240 = arith.mulf %237, %237 : vector<8x1xf32>
    %241 = arith.subf %239, %240 : vector<8x1xf32>
    %242 = vector.broadcast %237 : vector<8x1xf32> to vector<8x128xf32>
    %243 = arith.subf %230, %242 : vector<8x128xf32>
    %cst_89 = arith.constant 9.99999974E-6 : f32
    %244 = vector.broadcast %cst_89 : f32 to vector<8x1xf32>
    %245 = arith.addf %241, %244 : vector<8x1xf32>
    %246 = math.rsqrt %245 : vector<8x1xf32>
    %247 = vector.broadcast %246 : vector<8x1xf32> to vector<8x128xf32>
    %248 = arith.mulf %243, %247 : vector<8x128xf32>
    %249 = vector.broadcast %3 : vector<1x128xf32> to vector<8x128xf32>
    %250 = arith.mulf %248, %249 : vector<8x128xf32>
    %251 = vector.broadcast %4 : vector<1x128xf32> to vector<8x128xf32>
    %252 = arith.addf %250, %251 : vector<8x128xf32>
    %cst_90 = arith.constant 0.000000e+00 : f32
    %253 = vector.broadcast %cst_90 : f32 to vector<8x128xf32>
    %254 = arith.maximumf %252, %253 : vector<8x128xf32>
    %cst_91 = arith.constant dense<0.000000e+00> : vector<8x128xf32>
    %255 = tpu.matmul %254, %8, %cst_91 {dimension_numbers = #tpu.dot_dimension_numbers<[1], [0], [0], [1], [0, 0, 1, 1], [], []>} : vector<8x128xf32>, vector<128x128xf32>, vector<8x128xf32> -> vector<8x128xf32>
    %256 = arith.addf %255, %11 : vector<8x128xf32>
    %cst_92 = arith.constant dense<0.000000e+00> : vector<8xf32>
    %257 = vector.multi_reduction <add>, %256, %cst_92 [1] : vector<8x128xf32> to vector<8xf32>
    %258 = vector.shape_cast %257 : vector<8xf32> to vector<8x1xf32>
    %259 = arith.mulf %256, %256 : vector<8x128xf32>
    %cst_93 = arith.constant dense<0.000000e+00> : vector<8xf32>
    %260 = vector.multi_reduction <add>, %259, %cst_93 [1] : vector<8x128xf32> to vector<8xf32>
    %261 = vector.shape_cast %260 : vector<8xf32> to vector<8x1xf32>
    %cst_94 = arith.constant 3.125000e-02 : f32
    %262 = vector.broadcast %cst_94 : f32 to vector<8x1xf32>
    %263 = arith.mulf %258, %262 : vector<8x1xf32>
    %cst_95 = arith.constant 3.125000e-02 : f32
    %264 = vector.broadcast %cst_95 : f32 to vector<8x1xf32>
    %265 = arith.mulf %261, %264 : vector<8x1xf32>
    %266 = arith.mulf %263, %263 : vector<8x1xf32>
    %267 = arith.subf %265, %266 : vector<8x1xf32>
    %268 = vector.broadcast %263 : vector<8x1xf32> to vector<8x128xf32>
    %269 = arith.subf %256, %268 : vector<8x128xf32>
    %cst_96 = arith.constant 9.99999974E-6 : f32
    %270 = vector.broadcast %cst_96 : f32 to vector<8x1xf32>
    %271 = arith.addf %267, %270 : vector<8x1xf32>
    %272 = math.rsqrt %271 : vector<8x1xf32>
    %273 = vector.broadcast %272 : vector<8x1xf32> to vector<8x128xf32>
    %274 = arith.mulf %269, %273 : vector<8x128xf32>
    %275 = vector.broadcast %5 : vector<1x128xf32> to vector<8x128xf32>
    %276 = arith.mulf %274, %275 : vector<8x128xf32>
    %277 = vector.broadcast %6 : vector<1x128xf32> to vector<8x128xf32>
    %278 = arith.addf %276, %277 : vector<8x128xf32>
    %cst_97 = arith.constant 0.000000e+00 : f32
    %279 = vector.broadcast %cst_97 : f32 to vector<8x128xf32>
    %280 = arith.maximumf %278, %279 : vector<8x128xf32>
    %c0_98 = arith.constant 0 : index
    %c384 = arith.constant 384 : index
    %281 = vector.load %arg6[%c0_98, %c384] : memref<8x768xf32, #tpu.memory_space<vmem>>, vector<8x128xf32>
    tpu.vector_store %arg6[%c0_98, %c384], %280 {strides = array<i32>} : memref<8x768xf32, #tpu.memory_space<vmem>>, vector<8x128xf32>,
    %c0_99 = arith.constant 0 : index
    %c8 = arith.constant 8 : index
    %282 = vector.load %arg2[%c0_99, %c8] : memref<8x12xf32, #tpu.memory_space<vmem>>, vector<8x1xf32>
    %283 = arith.subf %12, %282 : vector<8x1xf32>
    %c0_100 = arith.constant 0 : index
    %c9 = arith.constant 9 : index
    %284 = vector.load %arg2[%c0_100, %c9] : memref<8x12xf32, #tpu.memory_space<vmem>>, vector<8x1xf32>
    %285 = arith.subf %13, %284 : vector<8x1xf32>
    %286 = vector.broadcast %283 : vector<8x1xf32> to vector<8x128xf32>
    %287 = vector.broadcast %0 : vector<1x128xf32> to vector<8x128xf32>
    %288 = arith.mulf %286, %287 : vector<8x128xf32>
    %289 = vector.broadcast %285 : vector<8x1xf32> to vector<8x128xf32>
    %290 = vector.broadcast %1 : vector<1x128xf32> to vector<8x128xf32>
    %291 = arith.mulf %289, %290 : vector<8x128xf32>
    %292 = arith.addf %288, %291 : vector<8x128xf32>
    %293 = vector.broadcast %2 : vector<1x128xf32> to vector<8x128xf32>
    %294 = arith.addf %292, %293 : vector<8x128xf32>
    %cst_101 = arith.constant 0.000000e+00 : f32
    %295 = vector.broadcast %cst_101 : f32 to vector<8x128xf32>
    %296 = arith.maximumf %294, %295 : vector<8x128xf32>
    %cst_102 = arith.constant dense<0.000000e+00> : vector<8x128xf32>
    %297 = tpu.matmul %296, %7, %cst_102 {dimension_numbers = #tpu.dot_dimension_numbers<[1], [0], [0], [1], [0, 0, 1, 1], [], []>} : vector<8x128xf32>, vector<128x128xf32>, vector<8x128xf32> -> vector<8x128xf32>
    %cst_103 = arith.constant dense<0.000000e+00> : vector<8xf32>
    %298 = vector.multi_reduction <add>, %297, %cst_103 [1] : vector<8x128xf32> to vector<8xf32>
    %299 = vector.shape_cast %298 : vector<8xf32> to vector<8x1xf32>
    %300 = arith.mulf %297, %297 : vector<8x128xf32>
    %cst_104 = arith.constant dense<0.000000e+00> : vector<8xf32>
    %301 = vector.multi_reduction <add>, %300, %cst_104 [1] : vector<8x128xf32> to vector<8xf32>
    %302 = vector.shape_cast %301 : vector<8xf32> to vector<8x1xf32>
    %cst_105 = arith.constant 3.125000e-02 : f32
    %303 = vector.broadcast %cst_105 : f32 to vector<8x1xf32>
    %304 = arith.mulf %299, %303 : vector<8x1xf32>
    %cst_106 = arith.constant 3.125000e-02 : f32
    %305 = vector.broadcast %cst_106 : f32 to vector<8x1xf32>
    %306 = arith.mulf %302, %305 : vector<8x1xf32>
    %307 = arith.mulf %304, %304 : vector<8x1xf32>
    %308 = arith.subf %306, %307 : vector<8x1xf32>
    %309 = vector.broadcast %304 : vector<8x1xf32> to vector<8x128xf32>
    %310 = arith.subf %297, %309 : vector<8x128xf32>
    %cst_107 = arith.constant 9.99999974E-6 : f32
    %311 = vector.broadcast %cst_107 : f32 to vector<8x1xf32>
    %312 = arith.addf %308, %311 : vector<8x1xf32>
    %313 = math.rsqrt %312 : vector<8x1xf32>
    %314 = vector.broadcast %313 : vector<8x1xf32> to vector<8x128xf32>
    %315 = arith.mulf %310, %314 : vector<8x128xf32>
    %316 = vector.broadcast %3 : vector<1x128xf32> to vector<8x128xf32>
    %317 = arith.mulf %315, %316 : vector<8x128xf32>
    %318 = vector.broadcast %4 : vector<1x128xf32> to vector<8x128xf32>
    %319 = arith.addf %317, %318 : vector<8x128xf32>
    %cst_108 = arith.constant 0.000000e+00 : f32
    %320 = vector.broadcast %cst_108 : f32 to vector<8x128xf32>
    %321 = arith.maximumf %319, %320 : vector<8x128xf32>
    %cst_109 = arith.constant dense<0.000000e+00> : vector<8x128xf32>
    %322 = tpu.matmul %321, %8, %cst_109 {dimension_numbers = #tpu.dot_dimension_numbers<[1], [0], [0], [1], [0, 0, 1, 1], [], []>} : vector<8x128xf32>, vector<128x128xf32>, vector<8x128xf32> -> vector<8x128xf32>
    %323 = arith.addf %322, %11 : vector<8x128xf32>
    %cst_110 = arith.constant dense<0.000000e+00> : vector<8xf32>
    %324 = vector.multi_reduction <add>, %323, %cst_110 [1] : vector<8x128xf32> to vector<8xf32>
    %325 = vector.shape_cast %324 : vector<8xf32> to vector<8x1xf32>
    %326 = arith.mulf %323, %323 : vector<8x128xf32>
    %cst_111 = arith.constant dense<0.000000e+00> : vector<8xf32>
    %327 = vector.multi_reduction <add>, %326, %cst_111 [1] : vector<8x128xf32> to vector<8xf32>
    %328 = vector.shape_cast %327 : vector<8xf32> to vector<8x1xf32>
    %cst_112 = arith.constant 3.125000e-02 : f32
    %329 = vector.broadcast %cst_112 : f32 to vector<8x1xf32>
    %330 = arith.mulf %325, %329 : vector<8x1xf32>
    %cst_113 = arith.constant 3.125000e-02 : f32
    %331 = vector.broadcast %cst_113 : f32 to vector<8x1xf32>
    %332 = arith.mulf %328, %331 : vector<8x1xf32>
    %333 = arith.mulf %330, %330 : vector<8x1xf32>
    %334 = arith.subf %332, %333 : vector<8x1xf32>
    %335 = vector.broadcast %330 : vector<8x1xf32> to vector<8x128xf32>
    %336 = arith.subf %323, %335 : vector<8x128xf32>
    %cst_114 = arith.constant 9.99999974E-6 : f32
    %337 = vector.broadcast %cst_114 : f32 to vector<8x1xf32>
    %338 = arith.addf %334, %337 : vector<8x1xf32>
    %339 = math.rsqrt %338 : vector<8x1xf32>
    %340 = vector.broadcast %339 : vector<8x1xf32> to vector<8x128xf32>
    %341 = arith.mulf %336, %340 : vector<8x128xf32>
    %342 = vector.broadcast %5 : vector<1x128xf32> to vector<8x128xf32>
    %343 = arith.mulf %341, %342 : vector<8x128xf32>
    %344 = vector.broadcast %6 : vector<1x128xf32> to vector<8x128xf32>
    %345 = arith.addf %343, %344 : vector<8x128xf32>
    %cst_115 = arith.constant 0.000000e+00 : f32
    %346 = vector.broadcast %cst_115 : f32 to vector<8x128xf32>
    %347 = arith.maximumf %345, %346 : vector<8x128xf32>
    %c0_116 = arith.constant 0 : index
    %c512 = arith.constant 512 : index
    %348 = vector.load %arg6[%c0_116, %c512] : memref<8x768xf32, #tpu.memory_space<vmem>>, vector<8x128xf32>
    tpu.vector_store %arg6[%c0_116, %c512], %347 {strides = array<i32>} : memref<8x768xf32, #tpu.memory_space<vmem>>, vector<8x128xf32>,
    %c0_117 = arith.constant 0 : index
    %c10 = arith.constant 10 : index
    %349 = vector.load %arg2[%c0_117, %c10] : memref<8x12xf32, #tpu.memory_space<vmem>>, vector<8x1xf32>
    %350 = arith.subf %12, %349 : vector<8x1xf32>
    %c0_118 = arith.constant 0 : index
    %c11 = arith.constant 11 : index
    %351 = vector.load %arg2[%c0_118, %c11] : memref<8x12xf32, #tpu.memory_space<vmem>>, vector<8x1xf32>
    %352 = arith.subf %13, %351 : vector<8x1xf32>
    %353 = vector.broadcast %350 : vector<8x1xf32> to vector<8x128xf32>
    %354 = vector.broadcast %0 : vector<1x128xf32> to vector<8x128xf32>
    %355 = arith.mulf %353, %354 : vector<8x128xf32>
    %356 = vector.broadcast %352 : vector<8x1xf32> to vector<8x128xf32>
    %357 = vector.broadcast %1 : vector<1x128xf32> to vector<8x128xf32>
    %358 = arith.mulf %356, %357 : vector<8x128xf32>
    %359 = arith.addf %355, %358 : vector<8x128xf32>
    %360 = vector.broadcast %2 : vector<1x128xf32> to vector<8x128xf32>
    %361 = arith.addf %359, %360 : vector<8x128xf32>
    %cst_119 = arith.constant 0.000000e+00 : f32
    %362 = vector.broadcast %cst_119 : f32 to vector<8x128xf32>
    %363 = arith.maximumf %361, %362 : vector<8x128xf32>
    %cst_120 = arith.constant dense<0.000000e+00> : vector<8x128xf32>
    %364 = tpu.matmul %363, %7, %cst_120 {dimension_numbers = #tpu.dot_dimension_numbers<[1], [0], [0], [1], [0, 0, 1, 1], [], []>} : vector<8x128xf32>, vector<128x128xf32>, vector<8x128xf32> -> vector<8x128xf32>
    %cst_121 = arith.constant dense<0.000000e+00> : vector<8xf32>
    %365 = vector.multi_reduction <add>, %364, %cst_121 [1] : vector<8x128xf32> to vector<8xf32>
    %366 = vector.shape_cast %365 : vector<8xf32> to vector<8x1xf32>
    %367 = arith.mulf %364, %364 : vector<8x128xf32>
    %cst_122 = arith.constant dense<0.000000e+00> : vector<8xf32>
    %368 = vector.multi_reduction <add>, %367, %cst_122 [1] : vector<8x128xf32> to vector<8xf32>
    %369 = vector.shape_cast %368 : vector<8xf32> to vector<8x1xf32>
    %cst_123 = arith.constant 3.125000e-02 : f32
    %370 = vector.broadcast %cst_123 : f32 to vector<8x1xf32>
    %371 = arith.mulf %366, %370 : vector<8x1xf32>
    %cst_124 = arith.constant 3.125000e-02 : f32
    %372 = vector.broadcast %cst_124 : f32 to vector<8x1xf32>
    %373 = arith.mulf %369, %372 : vector<8x1xf32>
    %374 = arith.mulf %371, %371 : vector<8x1xf32>
    %375 = arith.subf %373, %374 : vector<8x1xf32>
    %376 = vector.broadcast %371 : vector<8x1xf32> to vector<8x128xf32>
    %377 = arith.subf %364, %376 : vector<8x128xf32>
    %cst_125 = arith.constant 9.99999974E-6 : f32
    %378 = vector.broadcast %cst_125 : f32 to vector<8x1xf32>
    %379 = arith.addf %375, %378 : vector<8x1xf32>
    %380 = math.rsqrt %379 : vector<8x1xf32>
    %381 = vector.broadcast %380 : vector<8x1xf32> to vector<8x128xf32>
    %382 = arith.mulf %377, %381 : vector<8x128xf32>
    %383 = vector.broadcast %3 : vector<1x128xf32> to vector<8x128xf32>
    %384 = arith.mulf %382, %383 : vector<8x128xf32>
    %385 = vector.broadcast %4 : vector<1x128xf32> to vector<8x128xf32>
    %386 = arith.addf %384, %385 : vector<8x128xf32>
    %cst_126 = arith.constant 0.000000e+00 : f32
    %387 = vector.broadcast %cst_126 : f32 to vector<8x128xf32>
    %388 = arith.maximumf %386, %387 : vector<8x128xf32>
    %cst_127 = arith.constant dense<0.000000e+00> : vector<8x128xf32>
    %389 = tpu.matmul %388, %8, %cst_127 {dimension_numbers = #tpu.dot_dimension_numbers<[1], [0], [0], [1], [0, 0, 1, 1], [], []>} : vector<8x128xf32>, vector<128x128xf32>, vector<8x128xf32> -> vector<8x128xf32>
    %390 = arith.addf %389, %11 : vector<8x128xf32>
    %cst_128 = arith.constant dense<0.000000e+00> : vector<8xf32>
    %391 = vector.multi_reduction <add>, %390, %cst_128 [1] : vector<8x128xf32> to vector<8xf32>
    %392 = vector.shape_cast %391 : vector<8xf32> to vector<8x1xf32>
    %393 = arith.mulf %390, %390 : vector<8x128xf32>
    %cst_129 = arith.constant dense<0.000000e+00> : vector<8xf32>
    %394 = vector.multi_reduction <add>, %393, %cst_129 [1] : vector<8x128xf32> to vector<8xf32>
    %395 = vector.shape_cast %394 : vector<8xf32> to vector<8x1xf32>
    %cst_130 = arith.constant 3.125000e-02 : f32
    %396 = vector.broadcast %cst_130 : f32 to vector<8x1xf32>
    %397 = arith.mulf %392, %396 : vector<8x1xf32>
    %cst_131 = arith.constant 3.125000e-02 : f32
    %398 = vector.broadcast %cst_131 : f32 to vector<8x1xf32>
    %399 = arith.mulf %395, %398 : vector<8x1xf32>
    %400 = arith.mulf %397, %397 : vector<8x1xf32>
    %401 = arith.subf %399, %400 : vector<8x1xf32>
    %402 = vector.broadcast %397 : vector<8x1xf32> to vector<8x128xf32>
    %403 = arith.subf %390, %402 : vector<8x128xf32>
    %cst_132 = arith.constant 9.99999974E-6 : f32
    %404 = vector.broadcast %cst_132 : f32 to vector<8x1xf32>
    %405 = arith.addf %401, %404 : vector<8x1xf32>
    %406 = math.rsqrt %405 : vector<8x1xf32>
    %407 = vector.broadcast %406 : vector<8x1xf32> to vector<8x128xf32>
    %408 = arith.mulf %403, %407 : vector<8x128xf32>
    %409 = vector.broadcast %5 : vector<1x128xf32> to vector<8x128xf32>
    %410 = arith.mulf %408, %409 : vector<8x128xf32>
    %411 = vector.broadcast %6 : vector<1x128xf32> to vector<8x128xf32>
    %412 = arith.addf %410, %411 : vector<8x128xf32>
    %cst_133 = arith.constant 0.000000e+00 : f32
    %413 = vector.broadcast %cst_133 : f32 to vector<8x128xf32>
    %414 = arith.maximumf %412, %413 : vector<8x128xf32>
    %c0_134 = arith.constant 0 : index
    %c640 = arith.constant 640 : index
    %415 = vector.load %arg6[%c0_134, %c640] : memref<8x768xf32, #tpu.memory_space<vmem>>, vector<8x128xf32>
    tpu.vector_store %arg6[%c0_134, %c640], %414 {strides = array<i32>} : memref<8x768xf32, #tpu.memory_space<vmem>>, vector<8x128xf32>,
    return
  }
  func.func @transform_0(%arg0: i32) -> (i32, i32) {
    %c0_i32 = arith.constant 0 : i32
    %c0_i32_0 = arith.constant 0 : i32
    return %arg0, %c0_i32 : i32, i32
  }
  func.func @transform_1(%arg0: i32) -> (i32, i32) {
    %c0_i32 = arith.constant 0 : i32
    %c0_i32_0 = arith.constant 0 : i32
    return %arg0, %c0_i32 : i32, i32
  }
  func.func @transform_2(%arg0: i32) -> (i32, i32) {
    %c0_i32 = arith.constant 0 : i32
    %c0_i32_0 = arith.constant 0 : i32
    return %arg0, %c0_i32 : i32, i32
  }
  func.func @transform_3(%arg0: i32) -> (i32, i32) {
    %c0_i32 = arith.constant 0 : i32
    %c0_i32_0 = arith.constant 0 : i32
    %c0_i32_1 = arith.constant 0 : i32
    return %c0_i32, %c0_i32_0 : i32, i32
  }
  func.func @transform_4(%arg0: i32) -> (i32, i32) {
    %c0_i32 = arith.constant 0 : i32
    %c0_i32_0 = arith.constant 0 : i32
    %c0_i32_1 = arith.constant 0 : i32
    return %c0_i32, %c0_i32_0 : i32, i32
  }
  func.func @transform_5(%arg0: i32) -> (i32, i32) {
    %c0_i32 = arith.constant 0 : i32
    %c0_i32_0 = arith.constant 0 : i32
    return %arg0, %c0_i32 : i32, i32
  }
}

</mosaic_0001>

<llo_original>
// kernel: tpu_custom_call.1
$region0: #{tpu_custom_call.1}
  #allocation0 [shape = 'u32[]', space=smem, size = 0x4, offset = 0x4, fixed_abs, tag = 'smem constant byte address 0x4 - core index']
  #allocation1 [shape = 'u32[144,128]{1,0:T(1,128)}', space=vmem, size = 0x12000, scoped, tag = 'internal scratch']
  %s0 = inlined_call_operand.vmem [shape: f32[8,2], index: 0, kind: input, shape index: {}]
  %s1 = inlined_call_operand.vmem [shape: f32[8,12], index: 1, kind: input, shape index: {}]
  %s2 = inlined_call_operand.vmem [shape: f32[8,128], index: 2, kind: input, shape index: {}]
  %s3 = inlined_call_operand.hbm [shape: f32[8,128], index: 3, kind: input, shape index: {}]
  %s4 = inlined_call_operand.hbm [shape: f32[384,128], index: 4, kind: input, shape index: {}]
  %s5 = inlined_call_operand.hbm [shape: f32[8,768], index: 5, kind: output, shape index: {}]
  %s6 = sld [smem:[#allocation0]]
  $region38: #{tpu_custom_call.1} parent=0
    _
  %s8 = ssub.s32 1, %s6
  %s9 = scalar_select 0, %s8, %s6
  $region1: #{tpu_custom_call.1} parent=0
    #allocation2 [shape = 'u8[4096]{0}', space=vmem, size = 0x1000, scoped, tag = 'input window, operand 3, single buffered']
    #allocation3 [shape = 's32[1]{0}', space=sflag, size = 0x4, scoped, tag = 'scoped memory for tpu_custom_call.1']
    #allocation4 [shape = 's32[1]{0}', space=sflag, size = 0x4, scoped, tag = 'scoped memory for tpu_custom_call.1']
    #allocation5 [shape = 'u8[196608]{0}', space=vmem, size = 0x30000, scoped, tag = 'input window, operand 4, single buffered']
    #allocation6 [shape = 's32[1]{0}', space=sflag, size = 0x4, scoped, tag = 'scoped memory for tpu_custom_call.1']
    #allocation7 [shape = 'u8[24576]{0}', space=vmem, size = 0x6000, scoped, tag = 'output window, operand 0, single buffered']
    %10 = vsyncpa [#allocation3], 0
    %11 = vsyncpa [#allocation6], 0
    %12 = vsyncpa [#allocation4], 0
    // Predicated region
    $region2: #{tpu_custom_call.1} parent=1 // pred_check
      _
    $region3: #{tpu_custom_call.1} parent=1 // pred_check_branch
      %14 = sbr.rel (0) target = $region5
    $region4: #{tpu_custom_call.1} parent=1 // pred_region
      _
    $region5: #{tpu_custom_call.1} parent=1 // pred_fallthru
      _
    // Predicated region
    $region6: #{tpu_custom_call.1} parent=1 // pred_check
      _
    $region7: #{tpu_custom_call.1} parent=1 // pred_check_branch
      %16 = sbr.rel (0) target = $region9
    $region8: #{tpu_custom_call.1} parent=1 // pred_region
      _
    $region9: #{tpu_custom_call.1} parent=1 // pred_fallthru
      _
    // Predicated region
    $region10: #{tpu_custom_call.1} parent=1 // pred_check
      _
    $region11: #{tpu_custom_call.1} parent=1 // pred_check_branch
      %18 = sbr.rel (0) target = $region13
    $region12: #{tpu_custom_call.1} parent=1 // pred_region
      _
    $region13: #{tpu_custom_call.1} parent=1 // pred_fallthru
      _
    // Predicated region
    $region14: #{tpu_custom_call.1} parent=1 // pred_check
      _
    $region15: #{tpu_custom_call.1} parent=1 // pred_check_branch
      %20 = sbr.rel (0) target = $region17
    $region16: #{tpu_custom_call.1} parent=1 // pred_region
      %s22 = ssub.s32 128, 128
      %23 = vsyncadd [#allocation3], %s22
      %s25 = sshll.u32 [#allocation2], 4
      %s26 = int_to_ptr.vmem [resolvable:$true] %s25
      %28 = dma.hbm_to_vmem [thread:$0]  %s3, 128, %s26, [#allocation3]
    $region17: #{tpu_custom_call.1} parent=1 // pred_fallthru
      _
    // Predicated region
    $region18: #{tpu_custom_call.1} parent=1 // pred_check
      _
    $region19: #{tpu_custom_call.1} parent=1 // pred_check_branch
      %30 = sbr.rel (0) target = $region21
    $region20: #{tpu_custom_call.1} parent=1 // pred_region
      %s32 = ssub.s32 6144, 6144
      %33 = vsyncadd [#allocation6], %s32
      %s34 = sshll.u32 [#allocation5], 4
      %s35 = int_to_ptr.vmem [resolvable:$true] %s34
      %40 = dma.hbm_to_vmem [thread:$0]  %s4, 6144, %s35, [#allocation6], 128, 128, 8
    $region21: #{tpu_custom_call.1} parent=1 // pred_fallthru
      _
    // Predicated region
    $region22: #{tpu_custom_call.1} parent=1 // pred_check
      _
    $region23: #{tpu_custom_call.1} parent=1 // pred_check_branch
      %42 = sbr.rel (0) target = $region25
    $region24: #{tpu_custom_call.1} parent=1 // pred_region
      %43 = dma.done [#allocation3], 128
    $region25: #{tpu_custom_call.1} parent=1 // pred_fallthru
      _
    // Predicated region
    $region26: #{tpu_custom_call.1} parent=1 // pred_check
      _
    $region27: #{tpu_custom_call.1} parent=1 // pred_check_branch
      %45 = sbr.rel (0) target = $region29
    $region28: #{tpu_custom_call.1} parent=1 // pred_region
      %46 = dma.done [#allocation6], 6144
    $region29: #{tpu_custom_call.1} parent=1 // pred_fallthru
      _
    %v47 = vld [vmem:[#allocation2] sm:$0x1]
    %v48 = vld [vmem:[#allocation2 + $0x1] sm:$0x1]
    %v49 = vld [vmem:[#allocation2 + $0x2] sm:$0x1]
    %v50 = vld [vmem:[#allocation2 + $0x3] sm:$0x1]
    %v51 = vld [vmem:[#allocation2 + $0x4] sm:$0x1]
    %v52 = vld [vmem:[#allocation2 + $0x5] sm:$0x1]
    %v53 = vld [vmem:[#allocation2 + $0x6] sm:$0x1]
    %v54 = vld [vmem:[#allocation5] sm:$0xff]
    %v55 = vld [vmem:[#allocation5 + $0x8] sm:$0xff]
    %v56 = vld [vmem:[#allocation5 + $0x10] sm:$0xff]
    %v57 = vld [vmem:[#allocation5 + $0x18] sm:$0xff]
    %v58 = vld [vmem:[#allocation5 + $0x20] sm:$0xff]
    %v59 = vld [vmem:[#allocation5 + $0x28] sm:$0xff]
    %v60 = vld [vmem:[#allocation5 + $0x30] sm:$0xff]
    %v61 = vld [vmem:[#allocation5 + $0x38] sm:$0xff]
    %v62 = vld [vmem:[#allocation5 + $0x40] sm:$0xff]
    %v63 = vld [vmem:[#allocation5 + $0x48] sm:$0xff]
    %v64 = vld [vmem:[#allocation5 + $0x50] sm:$0xff]
    %v65 = vld [vmem:[#allocation5 + $0x58] sm:$0xff]
    %v66 = vld [vmem:[#allocation5 + $0x60] sm:$0xff]
    %v67 = vld [vmem:[#allocation5 + $0x68] sm:$0xff]
    %v68 = vld [vmem:[#allocation5 + $0x70] sm:$0xff]
    %v69 = vld [vmem:[#allocation5 + $0x78] sm:$0xff]
    %v70 = vld [vmem:[#allocation5 + $0x80] sm:$0xff]
    %v71 = vld [vmem:[#allocation5 + $0x88] sm:$0xff]
    %v72 = vld [vmem:[#allocation5 + $0x90] sm:$0xff]
    %v73 = vld [vmem:[#allocation5 + $0x98] sm:$0xff]
    %v74 = vld [vmem:[#allocation5 + $0xa0] sm:$0xff]
    %v75 = vld [vmem:[#allocation5 + $0xa8] sm:$0xff]
    %v76 = vld [vmem:[#allocation5 + $0xb0] sm:$0xff]
    %v77 = vld [vmem:[#allocation5 + $0xb8] sm:$0xff]
    %v78 = vld [vmem:[#allocation5 + $0xc0] sm:$0xff]
    %v79 = vld [vmem:[#allocation5 + $0xc8] sm:$0xff]
    %v80 = vld [vmem:[#allocation5 + $0xd0] sm:$0xff]
    %v81 = vld [vmem:[#allocation5 + $0xd8] sm:$0xff]
    %v82 = vld [vmem:[#allocation5 + $0xe0] sm:$0xff]
    %v83 = vld [vmem:[#allocation5 + $0xe8] sm:$0xff]
    %v84 = vld [vmem:[#allocation5 + $0xf0] sm:$0xff]
    %v85 = vld [vmem:[#allocation5 + $0xf8] sm:$0xff]
    %v86 = vld [vmem:[#allocation5 + $0x100] sm:$0xff]
    %v87 = vld [vmem:[#allocation5 + $0x108] sm:$0xff]
    %v88 = vld [vmem:[#allocation5 + $0x110] sm:$0xff]
    %v89 = vld [vmem:[#allocation5 + $0x118] sm:$0xff]
    %v90 = vld [vmem:[#allocation5 + $0x120] sm:$0xff]
    %v91 = vld [vmem:[#allocation5 + $0x128] sm:$0xff]
    %v92 = vld [vmem:[#allocation5 + $0x130] sm:$0xff]
    %v93 = vld [vmem:[#allocation5 + $0x138] sm:$0xff]
    %v94 = vld [vmem:[#allocation5 + $0x140] sm:$0xff]
    %v95 = vld [vmem:[#allocation5 + $0x148] sm:$0xff]
    %v96 = vld [vmem:[#allocation5 + $0x150] sm:$0xff]
    %v97 = vld [vmem:[#allocation5 + $0x158] sm:$0xff]
    %v98 = vld [vmem:[#allocation5 + $0x160] sm:$0xff]
    %v99 = vld [vmem:[#allocation5 + $0x168] sm:$0xff]
    %v100 = vld [vmem:[#allocation5 + $0x170] sm:$0xff]
    %v101 = vld [vmem:[#allocation5 + $0x178] sm:$0xff]
    %v102 = vld [vmem:[%s2] sm:$0xff]
    %103 = vmatprep.subr.mxu0 0.0
    %104 = vmatpush1.msra.mxu0 %v86
    %105 = vmatprep.subr.mxu0 0.0
    %106 = vmatpush1.msra.mxu0 %v87
    %107 = vmatprep.subr.mxu0 0.0
    %108 = vmatpush1.msra.mxu0 %v88
    %109 = vmatprep.subr.mxu0 0.0
    %110 = vmatpush1.msra.mxu0 %v89
    %111 = vmatprep.subr.mxu0 0.0
    %112 = vmatpush1.msra.mxu0 %v90
    %113 = vmatprep.subr.mxu0 0.0
    %114 = vmatpush1.msra.mxu0 %v91
    %115 = vmatprep.subr.mxu0 0.0
    %116 = vmatpush1.msra.mxu0 %v92
    %117 = vmatprep.subr.mxu0 0.0
    %118 = vmatpush1.msra.mxu0 %v93
    %119 = vmatprep.subr.mxu0 0.0
    %120 = vmatpush1.msra.mxu0 %v94
    %121 = vmatprep.subr.mxu0 0.0
    %122 = vmatpush1.msra.mxu0 %v95
    %123 = vmatprep.subr.mxu0 0.0
    %124 = vmatpush1.msra.mxu0 %v96
    %125 = vmatprep.subr.mxu0 0.0
    %126 = vmatpush1.msra.mxu0 %v97
    %127 = vmatprep.subr.mxu0 0.0
    %128 = vmatpush1.msra.mxu0 %v98
    %129 = vmatprep.subr.mxu0 0.0
    %130 = vmatpush1.msra.mxu0 %v99
    %131 = vmatprep.subr.mxu0 0.0
    %132 = vmatpush1.msra.mxu0 %v100
    %133 = vmatprep.subr.mxu0 0.0
    %134 = vmatpush1.msra.mxu0 %v101
    %135 = vmatprep.subr.mxu0 0.0
    %136 = vmatpush1.msra.mxu0 0.0
    %137 = vmatprep.subr.mxu0 0.0
    %138 = vmatpush1.msra.mxu0 0.0
    %139 = vmatprep.subr.mxu0 0.0
    %140 = vmatpush1.msra.mxu0 0.0
    %141 = vmatprep.subr.mxu0 0.0
    %142 = vmatpush1.msra.mxu0 0.0
    %143 = vmatprep.subr.mxu0 0.0
    %144 = vmatpush1.msra.mxu0 0.0
    %145 = vmatprep.subr.mxu0 0.0
    %146 = vmatpush1.msra.mxu0 0.0
    %147 = vmatprep.subr.mxu0 0.0
    %148 = vmatpush1.msra.mxu0 0.0
    %149 = vmatprep.subr.mxu0 0.0
    %150 = vmatpush1.msra.mxu0 0.0
    %151 = vmatprep.subr.mxu0 0.0
    %152 = vmatpush1.msra.mxu0 0.0
    %153 = vmatprep.subr.mxu0 0.0
    %154 = vmatpush1.msra.mxu0 0.0
    %155 = vmatprep.subr.mxu0 0.0
    %156 = vmatpush1.msra.mxu0 0.0
    %157 = vmatprep.subr.mxu0 0.0
    %158 = vmatpush1.msra.mxu0 0.0
    %159 = vmatprep.subr.mxu0 0.0
    %160 = vmatpush1.msra.mxu0 0.0
    %161 = vmatprep.subr.mxu0 0.0
    %162 = vmatpush1.msra.mxu0 0.0
    %163 = vmatprep.subr.mxu0 0.0
    %164 = vmatpush1.msra.mxu0 0.0
    %165 = vmatprep.subr.mxu0 0.0
    %166 = vmatpush1.msra.mxu0 0.0
    %167 = vmatprep.mubr.f32.mxu0 0.0
    %168 = vmatmul.mubr.f32.gmra.mrb[0].mxu0 %v102
    %v169 = vpop.f32.mrb[0].mxu0
    %v170 = vadd.f32 0.0, %v169
    %v171 = vpop.f32.mrb[0].mxu0
    %172 = vdwg.mxu0
    %v173 = vld [vmem:[%s0] sm:$0xff]
    %v174 = vld [vmem:[%s1] sm:$0xff]
    %v175 = vsub.f32 %v173, %v174
    %177 = vset.pattern.permute.xlu0 0
    %178 = vperm.xlu0 %177, %v175
    %v179 = vpop.permute.xlu0 %178
    %v181 = vlaneseq
    %v182 = vshrl.u32 %v181, 7
    %v183 = vsub.s32 0, %v182
    %v184 = vrot.slane %v47, %v183
    %v185 = vmul.f32 %v179, %v184
    %186 = vset.pattern.permute.xlu0 1
    %187 = vperm.xlu0 %186, %v175
    %v188 = vpop.permute.xlu0 %187
    %v190 = vlaneseq
    %v191 = vshrl.u32 %v190, 7
    %v192 = vsub.s32 0, %v191
    %v193 = vrot.slane %v48, %v192
    %v194 = vmul.f32 %v188, %v193
    %v195 = vadd.f32 %v185, %v194
    %v196 = vlaneseq
    %v197 = vshrl.u32 %v196, 7
    %v198 = vsub.s32 0, %v197
    %v199 = vrot.slane %v49, %v198
    %v200 = vadd.f32 %v195, %v199
    %v201 = vmax.f32 %v200, 0.0
    %202 = vmatprep.subr.mxu0 0.0
    %203 = vmatpush1.msra.mxu0 %v54
    %204 = vmatprep.subr.mxu0 0.0
    %205 = vmatpush1.msra.mxu0 %v55
    %206 = vmatprep.subr.mxu0 0.0
    %207 = vmatpush1.msra.mxu0 %v56
    %208 = vmatprep.subr.mxu0 0.0
    %209 = vmatpush1.msra.mxu0 %v57
    %210 = vmatprep.subr.mxu0 0.0
    %211 = vmatpush1.msra.mxu0 %v58
    %212 = vmatprep.subr.mxu0 0.0
    %213 = vmatpush1.msra.mxu0 %v59
    %214 = vmatprep.subr.mxu0 0.0
    %215 = vmatpush1.msra.mxu0 %v60
    %216 = vmatprep.subr.mxu0 0.0
    %217 = vmatpush1.msra.mxu0 %v61
    %218 = vmatprep.subr.mxu0 0.0
    %219 = vmatpush1.msra.mxu0 %v62
    %220 = vmatprep.subr.mxu0 0.0
    %221 = vmatpush1.msra.mxu0 %v63
    %222 = vmatprep.subr.mxu0 0.0
    %223 = vmatpush1.msra.mxu0 %v64
    %224 = vmatprep.subr.mxu0 0.0
    %225 = vmatpush1.msra.mxu0 %v65
    %226 = vmatprep.subr.mxu0 0.0
    %227 = vmatpush1.msra.mxu0 %v66
    %228 = vmatprep.subr.mxu0 0.0
    %229 = vmatpush1.msra.mxu0 %v67
    %230 = vmatprep.subr.mxu0 0.0
    %231 = vmatpush1.msra.mxu0 %v68
    %232 = vmatprep.subr.mxu0 0.0
    %233 = vmatpush1.msra.mxu0 %v69
    %234 = vmatprep.subr.mxu0 0.0
    %235 = vmatpush1.msra.mxu0 0.0
    %236 = vmatprep.subr.mxu0 0.0
    %237 = vmatpush1.msra.mxu0 0.0
    %238 = vmatprep.subr.mxu0 0.0
    %239 = vmatpush1.msra.mxu0 0.0
    %240 = vmatprep.subr.mxu0 0.0
    %241 = vmatpush1.msra.mxu0 0.0
    %242 = vmatprep.subr.mxu0 0.0
    %243 = vmatpush1.msra.mxu0 0.0
    %244 = vmatprep.subr.mxu0 0.0
    %245 = vmatpush1.msra.mxu0 0.0
    %246 = vmatprep.subr.mxu0 0.0
    %247 = vmatpush1.msra.mxu0 0.0
    %248 = vmatprep.subr.mxu0 0.0
    %249 = vmatpush1.msra.mxu0 0.0
    %250 = vmatprep.subr.mxu0 0.0
    %251 = vmatpush1.msra.mxu0 0.0
    %252 = vmatprep.subr.mxu0 0.0
    %253 = vmatpush1.msra.mxu0 0.0
    %254 = vmatprep.subr.mxu0 0.0
    %255 = vmatpush1.msra.mxu0 0.0
    %256 = vmatprep.subr.mxu0 0.0
    %257 = vmatpush1.msra.mxu0 0.0
    %258 = vmatprep.subr.mxu0 0.0
    %259 = vmatpush1.msra.mxu0 0.0
    %260 = vmatprep.subr.mxu0 0.0
    %261 = vmatpush1.msra.mxu0 0.0
    %262 = vmatprep.subr.mxu0 0.0
    %263 = vmatpush1.msra.mxu0 0.0
    %264 = vmatprep.subr.mxu0 0.0
    %265 = vmatpush1.msra.mxu0 0.0
    %266 = vmatprep.mubr.f32.mxu0 0.0
    %267 = vmatmul.mubr.f32.gmra.mrb[0].mxu0 %v201
    %v268 = vpop.f32.mrb[0].mxu0
    %v269 = vadd.f32 0.0, %v268
    %v270 = vpop.f32.mrb[0].mxu0
    %271 = vdwg.mxu0
    %272 = vadd.xlane.f32.xlu0 %v269
    %v273 = vpop.xlane.xlu0 %272
    %v274 = vmul.f32 %v269, %v269
    %275 = vadd.xlane.f32.xlu0 %v274
    %v276 = vpop.xlane.xlu0 %275
    %v277 = vmul.f32 %v273, 0.03125
    %v278 = vmul.f32 %v276, 0.03125
    %v279 = vmul.f32 %v277, %v277
    %v280 = vsub.f32 %v278, %v279
    %v281 = vsub.f32 %v269, %v277
    %v282 = vadd.f32 %v280, 1e-05
    %v283 = vrsqrt.pop %v282
    %v284 = vmul.f32 %v281, %v283
    %v285 = vlaneseq
    %v286 = vshrl.u32 %v285, 7
    %v287 = vsub.s32 0, %v286
    %v288 = vrot.slane %v50, %v287
    %v289 = vmul.f32 %v284, %v288
    %v290 = vlaneseq
    %v291 = vshrl.u32 %v290, 7
    %v292 = vsub.s32 0, %v291
    %v293 = vrot.slane %v51, %v292
    %v294 = vadd.f32 %v289, %v293
    %v295 = vmax.f32 %v294, 0.0
    %296 = vmatprep.subr.mxu0 0.0
    %297 = vmatpush1.msra.mxu0 %v70
    %298 = vmatprep.subr.mxu0 0.0
    %299 = vmatpush1.msra.mxu0 %v71
    %300 = vmatprep.subr.mxu0 0.0
    %301 = vmatpush1.msra.mxu0 %v72
    %302 = vmatprep.subr.mxu0 0.0
    %303 = vmatpush1.msra.mxu0 %v73
    %304 = vmatprep.subr.mxu0 0.0
    %305 = vmatpush1.msra.mxu0 %v74
    %306 = vmatprep.subr.mxu0 0.0
    %307 = vmatpush1.msra.mxu0 %v75
    %308 = vmatprep.subr.mxu0 0.0
    %309 = vmatpush1.msra.mxu0 %v76
    %310 = vmatprep.subr.mxu0 0.0
    %311 = vmatpush1.msra.mxu0 %v77
    %312 = vmatprep.subr.mxu0 0.0
    %313 = vmatpush1.msra.mxu0 %v78
    %314 = vmatprep.subr.mxu0 0.0
    %315 = vmatpush1.msra.mxu0 %v79
    %316 = vmatprep.subr.mxu0 0.0
    %317 = vmatpush1.msra.mxu0 %v80
    %318 = vmatprep.subr.mxu0 0.0
    %319 = vmatpush1.msra.mxu0 %v81
    %320 = vmatprep.subr.mxu0 0.0
    %321 = vmatpush1.msra.mxu0 %v82
    %322 = vmatprep.subr.mxu0 0.0
    %323 = vmatpush1.msra.mxu0 %v83
    %324 = vmatprep.subr.mxu0 0.0
    %325 = vmatpush1.msra.mxu0 %v84
    %326 = vmatprep.subr.mxu0 0.0
    %327 = vmatpush1.msra.mxu0 %v85
    %328 = vmatprep.subr.mxu0 0.0
    %329 = vmatpush1.msra.mxu0 0.0
    %330 = vmatprep.subr.mxu0 0.0
    %331 = vmatpush1.msra.mxu0 0.0
    %332 = vmatprep.subr.mxu0 0.0
    %333 = vmatpush1.msra.mxu0 0.0
    %334 = vmatprep.subr.mxu0 0.0
    %335 = vmatpush1.msra.mxu0 0.0
    %336 = vmatprep.subr.mxu0 0.0
    %337 = vmatpush1.msra.mxu0 0.0
    %338 = vmatprep.subr.mxu0 0.0
    %339 = vmatpush1.msra.mxu0 0.0
    %340 = vmatprep.subr.mxu0 0.0
    %341 = vmatpush1.msra.mxu0 0.0
    %342 = vmatprep.subr.mxu0 0.0
    %343 = vmatpush1.msra.mxu0 0.0
    %344 = vmatprep.subr.mxu0 0.0
    %345 = vmatpush1.msra.mxu0 0.0
    %346 = vmatprep.subr.mxu0 0.0
    %347 = vmatpush1.msra.mxu0 0.0
    %348 = vmatprep.subr.mxu0 0.0
    %349 = vmatpush1.msra.mxu0 0.0
    %350 = vmatprep.subr.mxu0 0.0
    %351 = vmatpush1.msra.mxu0 0.0
    %352 = vmatprep.subr.mxu0 0.0
    %353 = vmatpush1.msra.mxu0 0.0
    %354 = vmatprep.subr.mxu0 0.0
    %355 = vmatpush1.msra.mxu0 0.0
    %356 = vmatprep.subr.mxu0 0.0
    %357 = vmatpush1.msra.mxu0 0.0
    %358 = vmatprep.subr.mxu0 0.0
    %359 = vmatpush1.msra.mxu0 0.0
    %360 = vmatprep.mubr.f32.mxu0 0.0
    %361 = vmatmul.mubr.f32.gmra.mrb[0].mxu0 %v295
    %v362 = vpop.f32.mrb[0].mxu0
    %v363 = vadd.f32 %v170, %v362
    %v364 = vpop.f32.mrb[0].mxu0
    %365 = vdwg.mxu0
    %366 = vadd.xlane.f32.xlu0 %v363
    %v367 = vpop.xlane.xlu0 %366
    %v368 = vmul.f32 %v363, %v363
    %369 = vadd.xlane.f32.xlu0 %v368
    %v370 = vpop.xlane.xlu0 %369
    %v371 = vmul.f32 %v367, 0.03125
    %v372 = vmul.f32 %v370, 0.03125
    %v373 = vmul.f32 %v371, %v371
    %v374 = vsub.f32 %v372, %v373
    %v375 = vsub.f32 %v363, %v371
    %v376 = vadd.f32 %v374, 1e-05
    %v377 = vrsqrt.pop %v376
    %v378 = vmul.f32 %v375, %v377
    %v379 = vlaneseq
    %v380 = vshrl.u32 %v379, 7
    %v381 = vsub.s32 0, %v380
    %v382 = vrot.slane %v52, %v381
    %v383 = vmul.f32 %v378, %v382
    %v384 = vlaneseq
    %v385 = vshrl.u32 %v384, 7
    %v386 = vsub.s32 0, %v385
    %v387 = vrot.slane %v53, %v386
    %v388 = vadd.f32 %v383, %v387
    %v389 = vmax.f32 %v388, 0.0
    %390 = vst [vmem:[#allocation7] sm:$0xff] %v389
    %v391 = vld [vmem:[%s1] sm:$0xff]
    %393 = vrot.lane.b32.xlu0 %v391, 126
    %v394 = vpop.permute.xlu0 %393
    %v396 = vsub.f32 %v173, %v394
    %398 = vset.pattern.permute.xlu0 0
    %399 = vperm.xlu0 %398, %v396
    %v400 = vpop.permute.xlu0 %399
    %v402 = vmul.f32 %v400, %v184
    %403 = vset.pattern.permute.xlu0 1
    %404 = vperm.xlu0 %403, %v396
    %v405 = vpop.permute.xlu0 %404
    %v407 = vmul.f32 %v405, %v193
    %v408 = vadd.f32 %v402, %v407
    %v409 = vadd.f32 %v408, %v199
    %v410 = vmax.f32 %v409, 0.0
    %411 = vmatprep.subr.mxu0 0.0
    %412 = vmatpush1.msra.mxu0 %v54
    %413 = vmatprep.subr.mxu0 0.0
    %414 = vmatpush1.msra.mxu0 %v55
    %415 = vmatprep.subr.mxu0 0.0
    %416 = vmatpush1.msra.mxu0 %v56
    %417 = vmatprep.subr.mxu0 0.0
    %418 = vmatpush1.msra.mxu0 %v57
    %419 = vmatprep.subr.mxu0 0.0
    %420 = vmatpush1.msra.mxu0 %v58
    %421 = vmatprep.subr.mxu0 0.0
    %422 = vmatpush1.msra.mxu0 %v59
    %423 = vmatprep.subr.mxu0 0.0
    %424 = vmatpush1.msra.mxu0 %v60
    %425 = vmatprep.subr.mxu0 0.0
    %426 = vmatpush1.msra.mxu0 %v61
    %427 = vmatprep.subr.mxu0 0.0
    %428 = vmatpush1.msra.mxu0 %v62
    %429 = vmatprep.subr.mxu0 0.0
    %430 = vmatpush1.msra.mxu0 %v63
    %431 = vmatprep.subr.mxu0 0.0
    %432 = vmatpush1.msra.mxu0 %v64
    %433 = vmatprep.subr.mxu0 0.0
    %434 = vmatpush1.msra.mxu0 %v65
    %435 = vmatprep.subr.mxu0 0.0
    %436 = vmatpush1.msra.mxu0 %v66
    %437 = vmatprep.subr.mxu0 0.0
    %438 = vmatpush1.msra.mxu0 %v67
    %439 = vmatprep.subr.mxu0 0.0
    %440 = vmatpush1.msra.mxu0 %v68
    %441 = vmatprep.subr.mxu0 0.0
    %442 = vmatpush1.msra.mxu0 %v69
    %443 = vmatprep.subr.mxu0 0.0
    %444 = vmatpush1.msra.mxu0 0.0
    %445 = vmatprep.subr.mxu0 0.0
    %446 = vmatpush1.msra.mxu0 0.0
    %447 = vmatprep.subr.mxu0 0.0
    %448 = vmatpush1.msra.mxu0 0.0
    %449 = vmatprep.subr.mxu0 0.0
    %450 = vmatpush1.msra.mxu0 0.0
    %451 = vmatprep.subr.mxu0 0.0
    %452 = vmatpush1.msra.mxu0 0.0
    %453 = vmatprep.subr.mxu0 0.0
    %454 = vmatpush1.msra.mxu0 0.0
    %455 = vmatprep.subr.mxu0 0.0
    %456 = vmatpush1.msra.mxu0 0.0
    %457 = vmatprep.subr.mxu0 0.0
    %458 = vmatpush1.msra.mxu0 0.0
    %459 = vmatprep.subr.mxu0 0.0
    %460 = vmatpush1.msra.mxu0 0.0
    %461 = vmatprep.subr.mxu0 0.0
    %462 = vmatpush1.msra.mxu0 0.0
    %463 = vmatprep.subr.mxu0 0.0
    %464 = vmatpush1.msra.mxu0 0.0
    %465 = vmatprep.subr.mxu0 0.0
    %466 = vmatpush1.msra.mxu0 0.0
    %467 = vmatprep.subr.mxu0 0.0
    %468 = vmatpush1.msra.mxu0 0.0
    %469 = vmatprep.subr.mxu0 0.0
    %470 = vmatpush1.msra.mxu0 0.0
    %471 = vmatprep.subr.mxu0 0.0
    %472 = vmatpush1.msra.mxu0 0.0
    %473 = vmatprep.subr.mxu0 0.0
    %474 = vmatpush1.msra.mxu0 0.0
    %475 = vmatprep.mubr.f32.mxu0 0.0
    %476 = vmatmul.mubr.f32.gmra.mrb[0].mxu0 %v410
    %v477 = vpop.f32.mrb[0].mxu0
    %v478 = vadd.f32 0.0, %v477
    %v479 = vpop.f32.mrb[0].mxu0
    %480 = vdwg.mxu0
    %481 = vadd.xlane.f32.xlu0 %v478
    %v482 = vpop.xlane.xlu0 %481
    %v483 = vmul.f32 %v478, %v478
    %484 = vadd.xlane.f32.xlu0 %v483
    %v485 = vpop.xlane.xlu0 %484
    %v486 = vmul.f32 %v482, 0.03125
    %v487 = vmul.f32 %v485, 0.03125
    %v488 = vmul.f32 %v486, %v486
    %v489 = vsub.f32 %v487, %v488
    %v490 = vsub.f32 %v478, %v486
    %v491 = vadd.f32 %v489, 1e-05
    %v492 = vrsqrt.pop %v491
    %v493 = vmul.f32 %v490, %v492
    %v494 = vmul.f32 %v493, %v288
    %v495 = vadd.f32 %v494, %v293
    %v496 = vmax.f32 %v495, 0.0
    %497 = vmatprep.subr.mxu0 0.0
    %498 = vmatpush1.msra.mxu0 %v70
    %499 = vmatprep.subr.mxu0 0.0
    %500 = vmatpush1.msra.mxu0 %v71
    %501 = vmatprep.subr.mxu0 0.0
    %502 = vmatpush1.msra.mxu0 %v72
    %503 = vmatprep.subr.mxu0 0.0
    %504 = vmatpush1.msra.mxu0 %v73
    %505 = vmatprep.subr.mxu0 0.0
    %506 = vmatpush1.msra.mxu0 %v74
    %507 = vmatprep.subr.mxu0 0.0
    %508 = vmatpush1.msra.mxu0 %v75
    %509 = vmatprep.subr.mxu0 0.0
    %510 = vmatpush1.msra.mxu0 %v76
    %511 = vmatprep.subr.mxu0 0.0
    %512 = vmatpush1.msra.mxu0 %v77
    %513 = vmatprep.subr.mxu0 0.0
    %514 = vmatpush1.msra.mxu0 %v78
    %515 = vmatprep.subr.mxu0 0.0
    %516 = vmatpush1.msra.mxu0 %v79
    %517 = vmatprep.subr.mxu0 0.0
    %518 = vmatpush1.msra.mxu0 %v80
    %519 = vmatprep.subr.mxu0 0.0
    %520 = vmatpush1.msra.mxu0 %v81
    %521 = vmatprep.subr.mxu0 0.0
    %522 = vmatpush1.msra.mxu0 %v82
    %523 = vmatprep.subr.mxu0 0.0
    %524 = vmatpush1.msra.mxu0 %v83
    %525 = vmatprep.subr.mxu0 0.0
    %526 = vmatpush1.msra.mxu0 %v84
    %527 = vmatprep.subr.mxu0 0.0
    %528 = vmatpush1.msra.mxu0 %v85
    %529 = vmatprep.subr.mxu0 0.0
    %530 = vmatpush1.msra.mxu0 0.0
    %531 = vmatprep.subr.mxu0 0.0
    %532 = vmatpush1.msra.mxu0 0.0
    %533 = vmatprep.subr.mxu0 0.0
    %534 = vmatpush1.msra.mxu0 0.0
    %535 = vmatprep.subr.mxu0 0.0
    %536 = vmatpush1.msra.mxu0 0.0
    %537 = vmatprep.subr.mxu0 0.0
    %538 = vmatpush1.msra.mxu0 0.0
    %539 = vmatprep.subr.mxu0 0.0
    %540 = vmatpush1.msra.mxu0 0.0
    %541 = vmatprep.subr.mxu0 0.0
    %542 = vmatpush1.msra.mxu0 0.0
    %543 = vmatprep.subr.mxu0 0.0
    %544 = vmatpush1.msra.mxu0 0.0
    %545 = vmatprep.subr.mxu0 0.0
    %546 = vmatpush1.msra.mxu0 0.0
    %547 = vmatprep.subr.mxu0 0.0
    %548 = vmatpush1.msra.mxu0 0.0
    %549 = vmatprep.subr.mxu0 0.0
    %550 = vmatpush1.msra.mxu0 0.0
    %551 = vmatprep.subr.mxu0 0.0
    %552 = vmatpush1.msra.mxu0 0.0
    %553 = vmatprep.subr.mxu0 0.0
    %554 = vmatpush1.msra.mxu0 0.0
    %555 = vmatprep.subr.mxu0 0.0
    %556 = vmatpush1.msra.mxu0 0.0
    %557 = vmatprep.subr.mxu0 0.0
    %558 = vmatpush1.msra.mxu0 0.0
    %559 = vmatprep.subr.mxu0 0.0
    %560 = vmatpush1.msra.mxu0 0.0
    %561 = vmatprep.mubr.f32.mxu0 0.0
    %562 = vmatmul.mubr.f32.gmra.mrb[0].mxu0 %v496
    %v563 = vpop.f32.mrb[0].mxu0
    %v564 = vadd.f32 %v170, %v563
    %v565 = vpop.f32.mrb[0].mxu0
    %566 = vdwg.mxu0
    %567 = vadd.xlane.f32.xlu0 %v564
    %v568 = vpop.xlane.xlu0 %567
    %v569 = vmul.f32 %v564, %v564
    %570 = vadd.xlane.f32.xlu0 %v569
    %v571 = vpop.xlane.xlu0 %570
    %v572 = vmul.f32 %v568, 0.03125
    %v573 = vmul.f32 %v571, 0.03125
    %v574 = vmul.f32 %v572, %v572
    %v575 = vsub.f32 %v573, %v574
    %v576 = vsub.f32 %v564, %v572
    %v577 = vadd.f32 %v575, 1e-05
    %v578 = vrsqrt.pop %v577
    %v579 = vmul.f32 %v576, %v578
    %v580 = vmul.f32 %v579, %v382
    %v581 = vadd.f32 %v580, %v387
    %v582 = vmax.f32 %v581, 0.0
    %583 = vst [vmem:[#allocation7 + $0x8] sm:$0xff] %v582
    %v584 = vld [vmem:[%s1] sm:$0xff]
    %586 = vrot.lane.b32.xlu0 %v584, 124
    %v587 = vpop.permute.xlu0 %586
    %v589 = vsub.f32 %v173, %v587
    %591 = vset.pattern.permute.xlu0 0
    %592 = vperm.xlu0 %591, %v589
    %v593 = vpop.permute.xlu0 %592
    %v595 = vmul.f32 %v593, %v184
    %596 = vset.pattern.permute.xlu0 1
    %597 = vperm.xlu0 %596, %v589
    %v598 = vpop.permute.xlu0 %597
    %v600 = vmul.f32 %v598, %v193
    %v601 = vadd.f32 %v595, %v600
    %v602 = vadd.f32 %v601, %v199
    %v603 = vmax.f32 %v602, 0.0
    %604 = vmatprep.subr.mxu0 0.0
    %605 = vmatpush1.msra.mxu0 %v54
    %606 = vmatprep.subr.mxu0 0.0
    %607 = vmatpush1.msra.mxu0 %v55
    %608 = vmatprep.subr.mxu0 0.0
    %609 = vmatpush1.msra.mxu0 %v56
    %610 = vmatprep.subr.mxu0 0.0
    %611 = vmatpush1.msra.mxu0 %v57
    %612 = vmatprep.subr.mxu0 0.0
    %613 = vmatpush1.msra.mxu0 %v58
    %614 = vmatprep.subr.mxu0 0.0
    %615 = vmatpush1.msra.mxu0 %v59
    %616 = vmatprep.subr.mxu0 0.0
    %617 = vmatpush1.msra.mxu0 %v60
    %618 = vmatprep.subr.mxu0 0.0
    %619 = vmatpush1.msra.mxu0 %v61
    %620 = vmatprep.subr.mxu0 0.0
    %621 = vmatpush1.msra.mxu0 %v62
    %622 = vmatprep.subr.mxu0 0.0
    %623 = vmatpush1.msra.mxu0 %v63
    %624 = vmatprep.subr.mxu0 0.0
    %625 = vmatpush1.msra.mxu0 %v64
    %626 = vmatprep.subr.mxu0 0.0
    %627 = vmatpush1.msra.mxu0 %v65
    %628 = vmatprep.subr.mxu0 0.0
    %629 = vmatpush1.msra.mxu0 %v66
    %630 = vmatprep.subr.mxu0 0.0
    %631 = vmatpush1.msra.mxu0 %v67
    %632 = vmatprep.subr.mxu0 0.0
    %633 = vmatpush1.msra.mxu0 %v68
    %634 = vmatprep.subr.mxu0 0.0
    %635 = vmatpush1.msra.mxu0 %v69
    %636 = vmatprep.subr.mxu0 0.0
    %637 = vmatpush1.msra.mxu0 0.0
    %638 = vmatprep.subr.mxu0 0.0
    %639 = vmatpush1.msra.mxu0 0.0
    %640 = vmatprep.subr.mxu0 0.0
    %641 = vmatpush1.msra.mxu0 0.0
    %642 = vmatprep.subr.mxu0 0.0
    %643 = vmatpush1.msra.mxu0 0.0
    %644 = vmatprep.subr.mxu0 0.0
    %645 = vmatpush1.msra.mxu0 0.0
    %646 = vmatprep.subr.mxu0 0.0
    %647 = vmatpush1.msra.mxu0 0.0
    %648 = vmatprep.subr.mxu0 0.0
    %649 = vmatpush1.msra.mxu0 0.0
    %650 = vmatprep.subr.mxu0 0.0
    %651 = vmatpush1.msra.mxu0 0.0
    %652 = vmatprep.subr.mxu0 0.0
    %653 = vmatpush1.msra.mxu0 0.0
    %654 = vmatprep.subr.mxu0 0.0
    %655 = vmatpush1.msra.mxu0 0.0
    %656 = vmatprep.subr.mxu0 0.0
    %657 = vmatpush1.msra.mxu0 0.0
    %658 = vmatprep.subr.mxu0 0.0
    %659 = vmatpush1.msra.mxu0 0.0
    %660 = vmatprep.subr.mxu0 0.0
    %661 = vmatpush1.msra.mxu0 0.0
    %662 = vmatprep.subr.mxu0 0.0
    %663 = vmatpush1.msra.mxu0 0.0
    %664 = vmatprep.subr.mxu0 0.0
    %665 = vmatpush1.msra.mxu0 0.0
    %666 = vmatprep.subr.mxu0 0.0
    %667 = vmatpush1.msra.mxu0 0.0
    %668 = vmatprep.mubr.f32.mxu0 0.0
    %669 = vmatmul.mubr.f32.gmra.mrb[0].mxu0 %v603
    %v670 = vpop.f32.mrb[0].mxu0
    %v671 = vadd.f32 0.0, %v670
    %v672 = vpop.f32.mrb[0].mxu0
    %673 = vdwg.mxu0
    %674 = vadd.xlane.f32.xlu0 %v671
    %v675 = vpop.xlane.xlu0 %674
    %v676 = vmul.f32 %v671, %v671
    %677 = vadd.xlane.f32.xlu0 %v676
    %v678 = vpop.xlane.xlu0 %677
    %v679 = vmul.f32 %v675, 0.03125
    %v680 = vmul.f32 %v678, 0.03125
    %v681 = vmul.f32 %v679, %v679
    %v682 = vsub.f32 %v680, %v681
    %v683 = vsub.f32 %v671, %v679
    %v684 = vadd.f32 %v682, 1e-05
    %v685 = vrsqrt.pop %v684
    %v686 = vmul.f32 %v683, %v685
    %v687 = vmul.f32 %v686, %v288
    %v688 = vadd.f32 %v687, %v293
    %v689 = vmax.f32 %v688, 0.0
    %690 = vmatprep.subr.mxu0 0.0
    %691 = vmatpush1.msra.mxu0 %v70
    %692 = vmatprep.subr.mxu0 0.0
    %693 = vmatpush1.msra.mxu0 %v71
    %694 = vmatprep.subr.mxu0 0.0
    %695 = vmatpush1.msra.mxu0 %v72
    %696 = vmatprep.subr.mxu0 0.0
    %697 = vmatpush1.msra.mxu0 %v73
    %698 = vmatprep.subr.mxu0 0.0
    %699 = vmatpush1.msra.mxu0 %v74
    %700 = vmatprep.subr.mxu0 0.0
    %701 = vmatpush1.msra.mxu0 %v75
    %702 = vmatprep.subr.mxu0 0.0
    %703 = vmatpush1.msra.mxu0 %v76
    %704 = vmatprep.subr.mxu0 0.0
    %705 = vmatpush1.msra.mxu0 %v77
    %706 = vmatprep.subr.mxu0 0.0
    %707 = vmatpush1.msra.mxu0 %v78
    %708 = vmatprep.subr.mxu0 0.0
    %709 = vmatpush1.msra.mxu0 %v79
    %710 = vmatprep.subr.mxu0 0.0
    %711 = vmatpush1.msra.mxu0 %v80
    %712 = vmatprep.subr.mxu0 0.0
    %713 = vmatpush1.msra.mxu0 %v81
    %714 = vmatprep.subr.mxu0 0.0
    %715 = vmatpush1.msra.mxu0 %v82
    %716 = vmatprep.subr.mxu0 0.0
    %717 = vmatpush1.msra.mxu0 %v83
    %718 = vmatprep.subr.mxu0 0.0
    %719 = vmatpush1.msra.mxu0 %v84
    %720 = vmatprep.subr.mxu0 0.0
    %721 = vmatpush1.msra.mxu0 %v85
    %722 = vmatprep.subr.mxu0 0.0
    %723 = vmatpush1.msra.mxu0 0.0
    %724 = vmatprep.subr.mxu0 0.0
    %725 = vmatpush1.msra.mxu0 0.0
    %726 = vmatprep.subr.mxu0 0.0
    %727 = vmatpush1.msra.mxu0 0.0
    %728 = vmatprep.subr.mxu0 0.0
    %729 = vmatpush1.msra.mxu0 0.0
    %730 = vmatprep.subr.mxu0 0.0
    %731 = vmatpush1.msra.mxu0 0.0
    %732 = vmatprep.subr.mxu0 0.0
    %733 = vmatpush1.msra.mxu0 0.0
    %734 = vmatprep.subr.mxu0 0.0
    %735 = vmatpush1.msra.mxu0 0.0
    %736 = vmatprep.subr.mxu0 0.0
    %737 = vmatpush1.msra.mxu0 0.0
    %738 = vmatprep.subr.mxu0 0.0
    %739 = vmatpush1.msra.mxu0 0.0
    %740 = vmatprep.subr.mxu0 0.0
    %741 = vmatpush1.msra.mxu0 0.0
    %742 = vmatprep.subr.mxu0 0.0
    %743 = vmatpush1.msra.mxu0 0.0
    %744 = vmatprep.subr.mxu0 0.0
    %745 = vmatpush1.msra.mxu0 0.0
    %746 = vmatprep.subr.mxu0 0.0
    %747 = vmatpush1.msra.mxu0 0.0
    %748 = vmatprep.subr.mxu0 0.0
    %749 = vmatpush1.msra.mxu0 0.0
    %750 = vmatprep.subr.mxu0 0.0
    %751 = vmatpush1.msra.mxu0 0.0
    %752 = vmatprep.subr.mxu0 0.0
    %753 = vmatpush1.msra.mxu0 0.0
    %754 = vmatprep.mubr.f32.mxu0 0.0
    %755 = vmatmul.mubr.f32.gmra.mrb[0].mxu0 %v689
    %v756 = vpop.f32.mrb[0].mxu0
    %v757 = vadd.f32 %v170, %v756
    %v758 = vpop.f32.mrb[0].mxu0
    %759 = vdwg.mxu0
    %760 = vadd.xlane.f32.xlu0 %v757
    %v761 = vpop.xlane.xlu0 %760
    %v762 = vmul.f32 %v757, %v757
    %763 = vadd.xlane.f32.xlu0 %v762
    %v764 = vpop.xlane.xlu0 %763
    %v765 = vmul.f32 %v761, 0.03125
    %v766 = vmul.f32 %v764, 0.03125
    %v767 = vmul.f32 %v765, %v765
    %v768 = vsub.f32 %v766, %v767
    %v769 = vsub.f32 %v757, %v765
    %v770 = vadd.f32 %v768, 1e-05
    %v771 = vrsqrt.pop %v770
    %v772 = vmul.f32 %v769, %v771
    %v773 = vmul.f32 %v772, %v382
    %v774 = vadd.f32 %v773, %v387
    %v775 = vmax.f32 %v774, 0.0
    %776 = vst [vmem:[#allocation7 + $0x10] sm:$0xff] %v775
    %v777 = vld [vmem:[%s1] sm:$0xff]
    %779 = vrot.lane.b32.xlu0 %v777, 122
    %v780 = vpop.permute.xlu0 %779
    %v782 = vsub.f32 %v173, %v780
    %784 = vset.pattern.permute.xlu0 0
    %785 = vperm.xlu0 %784, %v782
    %v786 = vpop.permute.xlu0 %785
    %v788 = vmul.f32 %v786, %v184
    %789 = vset.pattern.permute.xlu0 1
    %790 = vperm.xlu0 %789, %v782
    %v791 = vpop.permute.xlu0 %790
    %v793 = vmul.f32 %v791, %v193
    %v794 = vadd.f32 %v788, %v793
    %v795 = vadd.f32 %v794, %v199
    %v796 = vmax.f32 %v795, 0.0
    %797 = vmatprep.subr.mxu0 0.0
    %798 = vmatpush1.msra.mxu0 %v54
    %799 = vmatprep.subr.mxu0 0.0
    %800 = vmatpush1.msra.mxu0 %v55
    %801 = vmatprep.subr.mxu0 0.0
    %802 = vmatpush1.msra.mxu0 %v56
    %803 = vmatprep.subr.mxu0 0.0
    %804 = vmatpush1.msra.mxu0 %v57
    %805 = vmatprep.subr.mxu0 0.0
    %806 = vmatpush1.msra.mxu0 %v58
    %807 = vmatprep.subr.mxu0 0.0
    %808 = vmatpush1.msra.mxu0 %v59
    %809 = vmatprep.subr.mxu0 0.0
    %810 = vmatpush1.msra.mxu0 %v60
    %811 = vmatprep.subr.mxu0 0.0
    %812 = vmatpush1.msra.mxu0 %v61
    %813 = vmatprep.subr.mxu0 0.0
    %814 = vmatpush1.msra.mxu0 %v62
    %815 = vmatprep.subr.mxu0 0.0
    %816 = vmatpush1.msra.mxu0 %v63
    %817 = vmatprep.subr.mxu0 0.0
    %818 = vmatpush1.msra.mxu0 %v64
    %819 = vmatprep.subr.mxu0 0.0
    %820 = vmatpush1.msra.mxu0 %v65
    %821 = vmatprep.subr.mxu0 0.0
    %822 = vmatpush1.msra.mxu0 %v66
    %823 = vmatprep.subr.mxu0 0.0
    %824 = vmatpush1.msra.mxu0 %v67
    %825 = vmatprep.subr.mxu0 0.0
    %826 = vmatpush1.msra.mxu0 %v68
    %827 = vmatprep.subr.mxu0 0.0
    %828 = vmatpush1.msra.mxu0 %v69
    %829 = vmatprep.subr.mxu0 0.0
    %830 = vmatpush1.msra.mxu0 0.0
    %831 = vmatprep.subr.mxu0 0.0
    %832 = vmatpush1.msra.mxu0 0.0
    %833 = vmatprep.subr.mxu0 0.0
    %834 = vmatpush1.msra.mxu0 0.0
    %835 = vmatprep.subr.mxu0 0.0
    %836 = vmatpush1.msra.mxu0 0.0
    %837 = vmatprep.subr.mxu0 0.0
    %838 = vmatpush1.msra.mxu0 0.0
    %839 = vmatprep.subr.mxu0 0.0
    %840 = vmatpush1.msra.mxu0 0.0
    %841 = vmatprep.subr.mxu0 0.0
    %842 = vmatpush1.msra.mxu0 0.0
    %843 = vmatprep.subr.mxu0 0.0
    %844 = vmatpush1.msra.mxu0 0.0
    %845 = vmatprep.subr.mxu0 0.0
    %846 = vmatpush1.msra.mxu0 0.0
    %847 = vmatprep.subr.mxu0 0.0
    %848 = vmatpush1.msra.mxu0 0.0
    %849 = vmatprep.subr.mxu0 0.0
    %850 = vmatpush1.msra.mxu0 0.0
    %851 = vmatprep.subr.mxu0 0.0
    %852 = vmatpush1.msra.mxu0 0.0
    %853 = vmatprep.subr.mxu0 0.0
    %854 = vmatpush1.msra.mxu0 0.0
    %855 = vmatprep.subr.mxu0 0.0
    %856 = vmatpush1.msra.mxu0 0.0
    %857 = vmatprep.subr.mxu0 0.0
    %858 = vmatpush1.msra.mxu0 0.0
    %859 = vmatprep.subr.mxu0 0.0
    %860 = vmatpush1.msra.mxu0 0.0
    %861 = vmatprep.mubr.f32.mxu0 0.0
    %862 = vmatmul.mubr.f32.gmra.mrb[0].mxu0 %v796
    %v863 = vpop.f32.mrb[0].mxu0
    %v864 = vadd.f32 0.0, %v863
    %v865 = vpop.f32.mrb[0].mxu0
    %866 = vdwg.mxu0
    %867 = vadd.xlane.f32.xlu0 %v864
    %v868 = vpop.xlane.xlu0 %867
    %v869 = vmul.f32 %v864, %v864
    %870 = vadd.xlane.f32.xlu0 %v869
    %v871 = vpop.xlane.xlu0 %870
    %v872 = vmul.f32 %v868, 0.03125
    %v873 = vmul.f32 %v871, 0.03125
    %v874 = vmul.f32 %v872, %v872
    %v875 = vsub.f32 %v873, %v874
    %v876 = vsub.f32 %v864, %v872
    %v877 = vadd.f32 %v875, 1e-05
    %v878 = vrsqrt.pop %v877
    %v879 = vmul.f32 %v876, %v878
    %v880 = vmul.f32 %v879, %v288
    %v881 = vadd.f32 %v880, %v293
    %v882 = vmax.f32 %v881, 0.0
    %883 = vmatprep.subr.mxu0 0.0
    %884 = vmatpush1.msra.mxu0 %v70
    %885 = vmatprep.subr.mxu0 0.0
    %886 = vmatpush1.msra.mxu0 %v71
    %887 = vmatprep.subr.mxu0 0.0
    %888 = vmatpush1.msra.mxu0 %v72
    %889 = vmatprep.subr.mxu0 0.0
    %890 = vmatpush1.msra.mxu0 %v73
    %891 = vmatprep.subr.mxu0 0.0
    %892 = vmatpush1.msra.mxu0 %v74
    %893 = vmatprep.subr.mxu0 0.0
    %894 = vmatpush1.msra.mxu0 %v75
    %895 = vmatprep.subr.mxu0 0.0
    %896 = vmatpush1.msra.mxu0 %v76
    %897 = vmatprep.subr.mxu0 0.0
    %898 = vmatpush1.msra.mxu0 %v77
    %899 = vmatprep.subr.mxu0 0.0
    %900 = vmatpush1.msra.mxu0 %v78
    %901 = vmatprep.subr.mxu0 0.0
    %902 = vmatpush1.msra.mxu0 %v79
    %903 = vmatprep.subr.mxu0 0.0
    %904 = vmatpush1.msra.mxu0 %v80
    %905 = vmatprep.subr.mxu0 0.0
    %906 = vmatpush1.msra.mxu0 %v81
    %907 = vmatprep.subr.mxu0 0.0
    %908 = vmatpush1.msra.mxu0 %v82
    %909 = vmatprep.subr.mxu0 0.0
    %910 = vmatpush1.msra.mxu0 %v83
    %911 = vmatprep.subr.mxu0 0.0
    %912 = vmatpush1.msra.mxu0 %v84
    %913 = vmatprep.subr.mxu0 0.0
    %914 = vmatpush1.msra.mxu0 %v85
    %915 = vmatprep.subr.mxu0 0.0
    %916 = vmatpush1.msra.mxu0 0.0
    %917 = vmatprep.subr.mxu0 0.0
    %918 = vmatpush1.msra.mxu0 0.0
    %919 = vmatprep.subr.mxu0 0.0
    %920 = vmatpush1.msra.mxu0 0.0
    %921 = vmatprep.subr.mxu0 0.0
    %922 = vmatpush1.msra.mxu0 0.0
    %923 = vmatprep.subr.mxu0 0.0
    %924 = vmatpush1.msra.mxu0 0.0
    %925 = vmatprep.subr.mxu0 0.0
    %926 = vmatpush1.msra.mxu0 0.0
    %927 = vmatprep.subr.mxu0 0.0
    %928 = vmatpush1.msra.mxu0 0.0
    %929 = vmatprep.subr.mxu0 0.0
    %930 = vmatpush1.msra.mxu0 0.0
    %931 = vmatprep.subr.mxu0 0.0
    %932 = vmatpush1.msra.mxu0 0.0
    %933 = vmatprep.subr.mxu0 0.0
    %934 = vmatpush1.msra.mxu0 0.0
    %935 = vmatprep.subr.mxu0 0.0
    %936 = vmatpush1.msra.mxu0 0.0
    %937 = vmatprep.subr.mxu0 0.0
    %938 = vmatpush1.msra.mxu0 0.0
    %939 = vmatprep.subr.mxu0 0.0
    %940 = vmatpush1.msra.mxu0 0.0
    %941 = vmatprep.subr.mxu0 0.0
    %942 = vmatpush1.msra.mxu0 0.0
    %943 = vmatprep.subr.mxu0 0.0
    %944 = vmatpush1.msra.mxu0 0.0
    %945 = vmatprep.subr.mxu0 0.0
    %946 = vmatpush1.msra.mxu0 0.0
    %947 = vmatprep.mubr.f32.mxu0 0.0
    %948 = vmatmul.mubr.f32.gmra.mrb[0].mxu0 %v882
    %v949 = vpop.f32.mrb[0].mxu0
    %v950 = vadd.f32 %v170, %v949
    %v951 = vpop.f32.mrb[0].mxu0
    %952 = vdwg.mxu0
    %953 = vadd.xlane.f32.xlu0 %v950
    %v954 = vpop.xlane.xlu0 %953
    %v955 = vmul.f32 %v950, %v950
    %956 = vadd.xlane.f32.xlu0 %v955
    %v957 = vpop.xlane.xlu0 %956
    %v958 = vmul.f32 %v954, 0.03125
    %v959 = vmul.f32 %v957, 0.03125
    %v960 = vmul.f32 %v958, %v958
    %v961 = vsub.f32 %v959, %v960
    %v962 = vsub.f32 %v950, %v958
    %v963 = vadd.f32 %v961, 1e-05
    %v964 = vrsqrt.pop %v963
    %v965 = vmul.f32 %v962, %v964
    %v966 = vmul.f32 %v965, %v382
    %v967 = vadd.f32 %v966, %v387
    %v968 = vmax.f32 %v967, 0.0
    %969 = vst [vmem:[#allocation7 + $0x18] sm:$0xff] %v968
    %v970 = vld [vmem:[%s1] sm:$0xff]
    %972 = vrot.lane.b32.xlu0 %v970, 120
    %v973 = vpop.permute.xlu0 %972
    %v975 = vsub.f32 %v173, %v973
    %977 = vset.pattern.permute.xlu0 0
    %978 = vperm.xlu0 %977, %v975
    %v979 = vpop.permute.xlu0 %978
    %v981 = vmul.f32 %v979, %v184
    %982 = vset.pattern.permute.xlu0 1
    %983 = vperm.xlu0 %982, %v975
    %v984 = vpop.permute.xlu0 %983
    %v986 = vmul.f32 %v984, %v193
    %v987 = vadd.f32 %v981, %v986
    %v988 = vadd.f32 %v987, %v199
    %v989 = vmax.f32 %v988, 0.0
    %990 = vmatprep.subr.mxu0 0.0
    %991 = vmatpush1.msra.mxu0 %v54
    %992 = vmatprep.subr.mxu0 0.0
    %993 = vmatpush1.msra.mxu0 %v55
    %994 = vmatprep.subr.mxu0 0.0
    %995 = vmatpush1.msra.mxu0 %v56
    %996 = vmatprep.subr.mxu0 0.0
    %997 = vmatpush1.msra.mxu0 %v57
    %998 = vmatprep.subr.mxu0 0.0
    %999 = vmatpush1.msra.mxu0 %v58
    %1000 = vmatprep.subr.mxu0 0.0
    %1001 = vmatpush1.msra.mxu0 %v59
    %1002 = vmatprep.subr.mxu0 0.0
    %1003 = vmatpush1.msra.mxu0 %v60
    %1004 = vmatprep.subr.mxu0 0.0
    %1005 = vmatpush1.msra.mxu0 %v61
    %1006 = vmatprep.subr.mxu0 0.0
    %1007 = vmatpush1.msra.mxu0 %v62
    %1008 = vmatprep.subr.mxu0 0.0
    %1009 = vmatpush1.msra.mxu0 %v63
    %1010 = vmatprep.subr.mxu0 0.0
    %1011 = vmatpush1.msra.mxu0 %v64
    %1012 = vmatprep.subr.mxu0 0.0
    %1013 = vmatpush1.msra.mxu0 %v65
    %1014 = vmatprep.subr.mxu0 0.0
    %1015 = vmatpush1.msra.mxu0 %v66
    %1016 = vmatprep.subr.mxu0 0.0
    %1017 = vmatpush1.msra.mxu0 %v67
    %1018 = vmatprep.subr.mxu0 0.0
    %1019 = vmatpush1.msra.mxu0 %v68
    %1020 = vmatprep.subr.mxu0 0.0
    %1021 = vmatpush1.msra.mxu0 %v69
    %1022 = vmatprep.subr.mxu0 0.0
    %1023 = vmatpush1.msra.mxu0 0.0
    %1024 = vmatprep.subr.mxu0 0.0
    %1025 = vmatpush1.msra.mxu0 0.0
    %1026 = vmatprep.subr.mxu0 0.0
    %1027 = vmatpush1.msra.mxu0 0.0
    %1028 = vmatprep.subr.mxu0 0.0
    %1029 = vmatpush1.msra.mxu0 0.0
    %1030 = vmatprep.subr.mxu0 0.0
    %1031 = vmatpush1.msra.mxu0 0.0
    %1032 = vmatprep.subr.mxu0 0.0
    %1033 = vmatpush1.msra.mxu0 0.0
    %1034 = vmatprep.subr.mxu0 0.0
    %1035 = vmatpush1.msra.mxu0 0.0
    %1036 = vmatprep.subr.mxu0 0.0
    %1037 = vmatpush1.msra.mxu0 0.0
    %1038 = vmatprep.subr.mxu0 0.0
    %1039 = vmatpush1.msra.mxu0 0.0
    %1040 = vmatprep.subr.mxu0 0.0
    %1041 = vmatpush1.msra.mxu0 0.0
    %1042 = vmatprep.subr.mxu0 0.0
    %1043 = vmatpush1.msra.mxu0 0.0
    %1044 = vmatprep.subr.mxu0 0.0
    %1045 = vmatpush1.msra.mxu0 0.0
    %1046 = vmatprep.subr.mxu0 0.0
    %1047 = vmatpush1.msra.mxu0 0.0
    %1048 = vmatprep.subr.mxu0 0.0
    %1049 = vmatpush1.msra.mxu0 0.0
    %1050 = vmatprep.subr.mxu0 0.0
    %1051 = vmatpush1.msra.mxu0 0.0
    %1052 = vmatprep.subr.mxu0 0.0
    %1053 = vmatpush1.msra.mxu0 0.0
    %1054 = vmatprep.mubr.f32.mxu0 0.0
    %1055 = vmatmul.mubr.f32.gmra.mrb[0].mxu0 %v989
    %v1056 = vpop.f32.mrb[0].mxu0
    %v1057 = vadd.f32 0.0, %v1056
    %v1058 = vpop.f32.mrb[0].mxu0
    %1059 = vdwg.mxu0
    %1060 = vadd.xlane.f32.xlu0 %v1057
    %v1061 = vpop.xlane.xlu0 %1060
    %v1062 = vmul.f32 %v1057, %v1057
    %1063 = vadd.xlane.f32.xlu0 %v1062
    %v1064 = vpop.xlane.xlu0 %1063
    %v1065 = vmul.f32 %v1061, 0.03125
    %v1066 = vmul.f32 %v1064, 0.03125
    %v1067 = vmul.f32 %v1065, %v1065
    %v1068 = vsub.f32 %v1066, %v1067
    %v1069 = vsub.f32 %v1057, %v1065
    %v1070 = vadd.f32 %v1068, 1e-05
    %v1071 = vrsqrt.pop %v1070
    %v1072 = vmul.f32 %v1069, %v1071
    %v1073 = vmul.f32 %v1072, %v288
    %v1074 = vadd.f32 %v1073, %v293
    %v1075 = vmax.f32 %v1074, 0.0
    %1076 = vmatprep.subr.mxu0 0.0
    %1077 = vmatpush1.msra.mxu0 %v70
    %1078 = vmatprep.subr.mxu0 0.0
    %1079 = vmatpush1.msra.mxu0 %v71
    %1080 = vmatprep.subr.mxu0 0.0
    %1081 = vmatpush1.msra.mxu0 %v72
    %1082 = vmatprep.subr.mxu0 0.0
    %1083 = vmatpush1.msra.mxu0 %v73
    %1084 = vmatprep.subr.mxu0 0.0
    %1085 = vmatpush1.msra.mxu0 %v74
    %1086 = vmatprep.subr.mxu0 0.0
    %1087 = vmatpush1.msra.mxu0 %v75
    %1088 = vmatprep.subr.mxu0 0.0
    %1089 = vmatpush1.msra.mxu0 %v76
    %1090 = vmatprep.subr.mxu0 0.0
    %1091 = vmatpush1.msra.mxu0 %v77
    %1092 = vmatprep.subr.mxu0 0.0
    %1093 = vmatpush1.msra.mxu0 %v78
    %1094 = vmatprep.subr.mxu0 0.0
    %1095 = vmatpush1.msra.mxu0 %v79
    %1096 = vmatprep.subr.mxu0 0.0
    %1097 = vmatpush1.msra.mxu0 %v80
    %1098 = vmatprep.subr.mxu0 0.0
    %1099 = vmatpush1.msra.mxu0 %v81
    %1100 = vmatprep.subr.mxu0 0.0
    %1101 = vmatpush1.msra.mxu0 %v82
    %1102 = vmatprep.subr.mxu0 0.0
    %1103 = vmatpush1.msra.mxu0 %v83
    %1104 = vmatprep.subr.mxu0 0.0
    %1105 = vmatpush1.msra.mxu0 %v84
    %1106 = vmatprep.subr.mxu0 0.0
    %1107 = vmatpush1.msra.mxu0 %v85
    %1108 = vmatprep.subr.mxu0 0.0
    %1109 = vmatpush1.msra.mxu0 0.0
    %1110 = vmatprep.subr.mxu0 0.0
    %1111 = vmatpush1.msra.mxu0 0.0
    %1112 = vmatprep.subr.mxu0 0.0
    %1113 = vmatpush1.msra.mxu0 0.0
    %1114 = vmatprep.subr.mxu0 0.0
    %1115 = vmatpush1.msra.mxu0 0.0
    %1116 = vmatprep.subr.mxu0 0.0
    %1117 = vmatpush1.msra.mxu0 0.0
    %1118 = vmatprep.subr.mxu0 0.0
    %1119 = vmatpush1.msra.mxu0 0.0
    %1120 = vmatprep.subr.mxu0 0.0
    %1121 = vmatpush1.msra.mxu0 0.0
    %1122 = vmatprep.subr.mxu0 0.0
    %1123 = vmatpush1.msra.mxu0 0.0
    %1124 = vmatprep.subr.mxu0 0.0
    %1125 = vmatpush1.msra.mxu0 0.0
    %1126 = vmatprep.subr.mxu0 0.0
    %1127 = vmatpush1.msra.mxu0 0.0
    %1128 = vmatprep.subr.mxu0 0.0
    %1129 = vmatpush1.msra.mxu0 0.0
    %1130 = vmatprep.subr.mxu0 0.0
    %1131 = vmatpush1.msra.mxu0 0.0
    %1132 = vmatprep.subr.mxu0 0.0
    %1133 = vmatpush1.msra.mxu0 0.0
    %1134 = vmatprep.subr.mxu0 0.0
    %1135 = vmatpush1.msra.mxu0 0.0
    %1136 = vmatprep.subr.mxu0 0.0
    %1137 = vmatpush1.msra.mxu0 0.0
    %1138 = vmatprep.subr.mxu0 0.0
    %1139 = vmatpush1.msra.mxu0 0.0
    %1140 = vmatprep.mubr.f32.mxu0 0.0
    %1141 = vmatmul.mubr.f32.gmra.mrb[0].mxu0 %v1075
    %v1142 = vpop.f32.mrb[0].mxu0
    %v1143 = vadd.f32 %v170, %v1142
    %v1144 = vpop.f32.mrb[0].mxu0
    %1145 = vdwg.mxu0
    %1146 = vadd.xlane.f32.xlu0 %v1143
    %v1147 = vpop.xlane.xlu0 %1146
    %v1148 = vmul.f32 %v1143, %v1143
    %1149 = vadd.xlane.f32.xlu0 %v1148
    %v1150 = vpop.xlane.xlu0 %1149
    %v1151 = vmul.f32 %v1147, 0.03125
    %v1152 = vmul.f32 %v1150, 0.03125
    %v1153 = vmul.f32 %v1151, %v1151
    %v1154 = vsub.f32 %v1152, %v1153
    %v1155 = vsub.f32 %v1143, %v1151
    %v1156 = vadd.f32 %v1154, 1e-05
    %v1157 = vrsqrt.pop %v1156
    %v1158 = vmul.f32 %v1155, %v1157
    %v1159 = vmul.f32 %v1158, %v382
    %v1160 = vadd.f32 %v1159, %v387
    %v1161 = vmax.f32 %v1160, 0.0
    %1162 = vst [vmem:[#allocation7 + $0x20] sm:$0xff] %v1161
    %v1163 = vld [vmem:[%s1] sm:$0xff]
    %1165 = vrot.lane.b32.xlu0 %v1163, 118
    %v1166 = vpop.permute.xlu0 %1165
    %v1168 = vsub.f32 %v173, %v1166
    %1170 = vset.pattern.permute.xlu0 0
    %1171 = vperm.xlu0 %1170, %v1168
    %v1172 = vpop.permute.xlu0 %1171
    %v1174 = vmul.f32 %v1172, %v184
    %1175 = vset.pattern.permute.xlu0 1
    %1176 = vperm.xlu0 %1175, %v1168
    %v1177 = vpop.permute.xlu0 %1176
    %v1179 = vmul.f32 %v1177, %v193
    %v1180 = vadd.f32 %v1174, %v1179
    %v1181 = vadd.f32 %v1180, %v199
    %v1182 = vmax.f32 %v1181, 0.0
    %1183 = vmatprep.subr.mxu0 0.0
    %1184 = vmatpush1.msra.mxu0 %v54
    %1185 = vmatprep.subr.mxu0 0.0
    %1186 = vmatpush1.msra.mxu0 %v55
    %1187 = vmatprep.subr.mxu0 0.0
    %1188 = vmatpush1.msra.mxu0 %v56
    %1189 = vmatprep.subr.mxu0 0.0
    %1190 = vmatpush1.msra.mxu0 %v57
    %1191 = vmatprep.subr.mxu0 0.0
    %1192 = vmatpush1.msra.mxu0 %v58
    %1193 = vmatprep.subr.mxu0 0.0
    %1194 = vmatpush1.msra.mxu0 %v59
    %1195 = vmatprep.subr.mxu0 0.0
    %1196 = vmatpush1.msra.mxu0 %v60
    %1197 = vmatprep.subr.mxu0 0.0
    %1198 = vmatpush1.msra.mxu0 %v61
    %1199 = vmatprep.subr.mxu0 0.0
    %1200 = vmatpush1.msra.mxu0 %v62
    %1201 = vmatprep.subr.mxu0 0.0
    %1202 = vmatpush1.msra.mxu0 %v63
    %1203 = vmatprep.subr.mxu0 0.0
    %1204 = vmatpush1.msra.mxu0 %v64
    %1205 = vmatprep.subr.mxu0 0.0
    %1206 = vmatpush1.msra.mxu0 %v65
    %1207 = vmatprep.subr.mxu0 0.0
    %1208 = vmatpush1.msra.mxu0 %v66
    %1209 = vmatprep.subr.mxu0 0.0
    %1210 = vmatpush1.msra.mxu0 %v67
    %1211 = vmatprep.subr.mxu0 0.0
    %1212 = vmatpush1.msra.mxu0 %v68
    %1213 = vmatprep.subr.mxu0 0.0
    %1214 = vmatpush1.msra.mxu0 %v69
    %1215 = vmatprep.subr.mxu0 0.0
    %1216 = vmatpush1.msra.mxu0 0.0
    %1217 = vmatprep.subr.mxu0 0.0
    %1218 = vmatpush1.msra.mxu0 0.0
    %1219 = vmatprep.subr.mxu0 0.0
    %1220 = vmatpush1.msra.mxu0 0.0
    %1221 = vmatprep.subr.mxu0 0.0
    %1222 = vmatpush1.msra.mxu0 0.0
    %1223 = vmatprep.subr.mxu0 0.0
    %1224 = vmatpush1.msra.mxu0 0.0
    %1225 = vmatprep.subr.mxu0 0.0
    %1226 = vmatpush1.msra.mxu0 0.0
    %1227 = vmatprep.subr.mxu0 0.0
    %1228 = vmatpush1.msra.mxu0 0.0
    %1229 = vmatprep.subr.mxu0 0.0
    %1230 = vmatpush1.msra.mxu0 0.0
    %1231 = vmatprep.subr.mxu0 0.0
    %1232 = vmatpush1.msra.mxu0 0.0
    %1233 = vmatprep.subr.mxu0 0.0
    %1234 = vmatpush1.msra.mxu0 0.0
    %1235 = vmatprep.subr.mxu0 0.0
    %1236 = vmatpush1.msra.mxu0 0.0
    %1237 = vmatprep.subr.mxu0 0.0
    %1238 = vmatpush1.msra.mxu0 0.0
    %1239 = vmatprep.subr.mxu0 0.0
    %1240 = vmatpush1.msra.mxu0 0.0
    %1241 = vmatprep.subr.mxu0 0.0
    %1242 = vmatpush1.msra.mxu0 0.0
    %1243 = vmatprep.subr.mxu0 0.0
    %1244 = vmatpush1.msra.mxu0 0.0
    %1245 = vmatprep.subr.mxu0 0.0
    %1246 = vmatpush1.msra.mxu0 0.0
    %1247 = vmatprep.mubr.f32.mxu0 0.0
    %1248 = vmatmul.mubr.f32.gmra.mrb[0].mxu0 %v1182
    %v1249 = vpop.f32.mrb[0].mxu0
    %v1250 = vadd.f32 0.0, %v1249
    %v1251 = vpop.f32.mrb[0].mxu0
    %1252 = vdwg.mxu0
    %1253 = vadd.xlane.f32.xlu0 %v1250
    %v1254 = vpop.xlane.xlu0 %1253
    %v1255 = vmul.f32 %v1250, %v1250
    %1256 = vadd.xlane.f32.xlu0 %v1255
    %v1257 = vpop.xlane.xlu0 %1256
    %v1258 = vmul.f32 %v1254, 0.03125
    %v1259 = vmul.f32 %v1257, 0.03125
    %v1260 = vmul.f32 %v1258, %v1258
    %v1261 = vsub.f32 %v1259, %v1260
    %v1262 = vsub.f32 %v1250, %v1258
    %v1263 = vadd.f32 %v1261, 1e-05
    %v1264 = vrsqrt.pop %v1263
    %v1265 = vmul.f32 %v1262, %v1264
    %v1266 = vmul.f32 %v1265, %v288
    %v1267 = vadd.f32 %v1266, %v293
    %v1268 = vmax.f32 %v1267, 0.0
    %1269 = vmatprep.subr.mxu0 0.0
    %1270 = vmatpush1.msra.mxu0 %v70
    %1271 = vmatprep.subr.mxu0 0.0
    %1272 = vmatpush1.msra.mxu0 %v71
    %1273 = vmatprep.subr.mxu0 0.0
    %1274 = vmatpush1.msra.mxu0 %v72
    %1275 = vmatprep.subr.mxu0 0.0
    %1276 = vmatpush1.msra.mxu0 %v73
    %1277 = vmatprep.subr.mxu0 0.0
    %1278 = vmatpush1.msra.mxu0 %v74
    %1279 = vmatprep.subr.mxu0 0.0
    %1280 = vmatpush1.msra.mxu0 %v75
    %1281 = vmatprep.subr.mxu0 0.0
    %1282 = vmatpush1.msra.mxu0 %v76
    %1283 = vmatprep.subr.mxu0 0.0
    %1284 = vmatpush1.msra.mxu0 %v77
    %1285 = vmatprep.subr.mxu0 0.0
    %1286 = vmatpush1.msra.mxu0 %v78
    %1287 = vmatprep.subr.mxu0 0.0
    %1288 = vmatpush1.msra.mxu0 %v79
    %1289 = vmatprep.subr.mxu0 0.0
    %1290 = vmatpush1.msra.mxu0 %v80
    %1291 = vmatprep.subr.mxu0 0.0
    %1292 = vmatpush1.msra.mxu0 %v81
    %1293 = vmatprep.subr.mxu0 0.0
    %1294 = vmatpush1.msra.mxu0 %v82
    %1295 = vmatprep.subr.mxu0 0.0
    %1296 = vmatpush1.msra.mxu0 %v83
    %1297 = vmatprep.subr.mxu0 0.0
    %1298 = vmatpush1.msra.mxu0 %v84
    %1299 = vmatprep.subr.mxu0 0.0
    %1300 = vmatpush1.msra.mxu0 %v85
    %1301 = vmatprep.subr.mxu0 0.0
    %1302 = vmatpush1.msra.mxu0 0.0
    %1303 = vmatprep.subr.mxu0 0.0
    %1304 = vmatpush1.msra.mxu0 0.0
    %1305 = vmatprep.subr.mxu0 0.0
    %1306 = vmatpush1.msra.mxu0 0.0
    %1307 = vmatprep.subr.mxu0 0.0
    %1308 = vmatpush1.msra.mxu0 0.0
    %1309 = vmatprep.subr.mxu0 0.0
    %1310 = vmatpush1.msra.mxu0 0.0
    %1311 = vmatprep.subr.mxu0 0.0
    %1312 = vmatpush1.msra.mxu0 0.0
    %1313 = vmatprep.subr.mxu0 0.0
    %1314 = vmatpush1.msra.mxu0 0.0
    %1315 = vmatprep.subr.mxu0 0.0
    %1316 = vmatpush1.msra.mxu0 0.0
    %1317 = vmatprep.subr.mxu0 0.0
    %1318 = vmatpush1.msra.mxu0 0.0
    %1319 = vmatprep.subr.mxu0 0.0
    %1320 = vmatpush1.msra.mxu0 0.0
    %1321 = vmatprep.subr.mxu0 0.0
    %1322 = vmatpush1.msra.mxu0 0.0
    %1323 = vmatprep.subr.mxu0 0.0
    %1324 = vmatpush1.msra.mxu0 0.0
    %1325 = vmatprep.subr.mxu0 0.0
    %1326 = vmatpush1.msra.mxu0 0.0
    %1327 = vmatprep.subr.mxu0 0.0
    %1328 = vmatpush1.msra.mxu0 0.0
    %1329 = vmatprep.subr.mxu0 0.0
    %1330 = vmatpush1.msra.mxu0 0.0
    %1331 = vmatprep.subr.mxu0 0.0
    %1332 = vmatpush1.msra.mxu0 0.0
    %1333 = vmatprep.mubr.f32.mxu0 0.0
    %1334 = vmatmul.mubr.f32.gmra.mrb[0].mxu0 %v1268
    %v1335 = vpop.f32.mrb[0].mxu0
    %v1336 = vadd.f32 %v170, %v1335
    %v1337 = vpop.f32.mrb[0].mxu0
    %1338 = vdwg.mxu0
    %1339 = vadd.xlane.f32.xlu0 %v1336
    %v1340 = vpop.xlane.xlu0 %1339
    %v1341 = vmul.f32 %v1336, %v1336
    %1342 = vadd.xlane.f32.xlu0 %v1341
    %v1343 = vpop.xlane.xlu0 %1342
    %v1344 = vmul.f32 %v1340, 0.03125
    %v1345 = vmul.f32 %v1343, 0.03125
    %v1346 = vmul.f32 %v1344, %v1344
    %v1347 = vsub.f32 %v1345, %v1346
    %v1348 = vsub.f32 %v1336, %v1344
    %v1349 = vadd.f32 %v1347, 1e-05
    %v1350 = vrsqrt.pop %v1349
    %v1351 = vmul.f32 %v1348, %v1350
    %v1352 = vmul.f32 %v1351, %v382
    %v1353 = vadd.f32 %v1352, %v387
    %v1354 = vmax.f32 %v1353, 0.0
    %1355 = vst [vmem:[#allocation7 + $0x28] sm:$0xff] %v1354
    // Predicated region
    $region30: #{tpu_custom_call.1} parent=1 // pred_check
      _
    $region31: #{tpu_custom_call.1} parent=1 // pred_check_branch
      %1357 = sbr.rel (0) target = $region33
    $region32: #{tpu_custom_call.1} parent=1 // pred_region
      %s1359 = ssub.s32 768, 768
      %1360 = vsyncadd [#allocation4], %s1359
      %s1362 = sshll.u32 [#allocation7], 4
      %s1363 = int_to_ptr.vmem [resolvable:$true] %s1362
      %1365 = dma.vmem_to_hbm [thread:$0]  %s1363, 768, %s5, [#allocation4]
    $region33: #{tpu_custom_call.1} parent=1 // pred_fallthru
      _
    // Predicated region
    $region34: #{tpu_custom_call.1} parent=1 // pred_check
      _
    $region35: #{tpu_custom_call.1} parent=1 // pred_check_branch
      %1367 = sbr.rel (0) target = $region37
    $region36: #{tpu_custom_call.1} parent=1 // pred_region
      %1368 = dma.done [#allocation4], 768
    $region37: #{tpu_custom_call.1} parent=1 // pred_fallthru
      _
    %1369 = vsyncpa [#allocation3], 1
    %1370 = vsyncpa [#allocation6], 1
    %1371 = vsyncpa [#allocation4], 1

</llo_original>
